<compile_context>
chip_gen: v6e
topology: v6e:2x2x1
jax: 0.10.0
libtpu: 0.0.40
codegen_flags: <defaults>
</compile_context>

<pallas_src>
import functools

import jax
import jax.numpy as jnp
from jax.experimental import pallas as pl
from jax.experimental.pallas import tpu as pltpu

N_EMBD = 256          # matches the PyTorch module's n_embd
DROPOUT = 0.2


# ----------------------------------------------------------------------------
# helpers
# ----------------------------------------------------------------------------
def _round_up(x, m):
    return ((x + m - 1) // m) * m


def _pad2(a, rows, cols):
    pr, pc = rows - a.shape[0], cols - a.shape[1]
    if pr == 0 and pc == 0:
        return a
    return jnp.pad(a, ((0, pr), (0, pc)))


def _i32_const(v):
    v &= 0xFFFFFFFF
    if v >= (1 << 31):
        v -= 1 << 32
    return jnp.int32(v)


def _srl(z, n):
    # Logical right shift emulated on int32 (portable: Mosaic + interpret).
    return (z >> n) & ((1 << (32 - n)) - 1)


def _tpu_config():
    """(TILE_M, vmem_limit_bytes, on_tpu) chosen per TPU generation."""
    kind = ""
    on_tpu = False
    try:
        dev = jax.devices()[0]
        on_tpu = dev.platform == "tpu"
        if on_tpu:
            kind = dev.device_kind.lower()
    except Exception:  # pragma: no cover - defensive
        pass
    if ("v5" in kind) or ("v6" in kind):
        # 128 MiB physical VMEM: big tiles amortize per-step grid overhead.
        return 2048, 96 * 1024 * 1024, on_tpu
    if on_tpu:
        # v7x (or unknown TPU): 64 MiB physical VMEM -> smaller tile/limit.
        return 1024, 48 * 1024 * 1024, on_tpu
    # Non-TPU (interpret) fallback: conservative, params unused anyway.
    return 512, None, on_tpu


# ----------------------------------------------------------------------------
# kernel
# ----------------------------------------------------------------------------
def ffn_kernel(seed_ref, x_ref, w1_ref, b1_ref, w2_ref, b2_ref, o_ref, *,
               dropout_rate, apply_dropout):
    # Linear 1 (MXU, f32 accumulate) + bias + ReLU in f32.
    h = jnp.dot(x_ref[...], w1_ref[...], preferred_element_type=jnp.float32)
    h = jnp.maximum(h + b1_ref[...], 0.0)
    # Linear 2: cast the activation back to the weight dtype for the MXU.
    y = jnp.dot(h.astype(w2_ref.dtype), w2_ref[...],
                preferred_element_type=jnp.float32)
    y = y + b2_ref[...]

    if apply_dropout:
        tm, c = y.shape
        rows = jax.lax.broadcasted_iota(jnp.int32, (tm, c), 0)
        cols = jax.lax.broadcasted_iota(jnp.int32, (tm, c), 1)
        row0 = pl.program_id(0) * tm                    # global row offset
        idx = (rows + row0) * c + cols                  # global element id
        # splitmix32-style mixer ("lowbias32"): pure int32 VPU ops.
        z = idx ^ (seed_ref[0] * _i32_const(0x9E3779B9))
        z = (z ^ _srl(z, 16)) * _i32_const(0x7FEB352D)
        z = (z ^ _srl(z, 15)) * _i32_const(0x846CA68B)
        z = z ^ _srl(z, 16)
        threshold = jnp.int32(int(dropout_rate * float(1 << 24)))
        keep = (z & jnp.int32(0xFFFFFF)) >= threshold   # pure integer compare
        scale = jnp.float32(1.0 / (1.0 - dropout_rate))
        y = jnp.where(keep, y * scale, 0.0)             # inverted dropout

    o_ref[...] = y.astype(o_ref.dtype)


# ----------------------------------------------------------------------------
# parameters & wrapper
# ----------------------------------------------------------------------------
def init_params(key, n_embd, dtype=jnp.float32):
    """nn.Linear-style init: U(-1/sqrt(fan_in), 1/sqrt(fan_in)); weights stored
    transposed relative to PyTorch (in, out) so the kernel does plain x @ W."""
    hidden = 4 * n_embd
    k1, k2, k3, k4 = jax.random.split(key, 4)
    lim1 = 1.0 / (n_embd ** 0.5)
    lim2 = 1.0 / (hidden ** 0.5)
    w1 = jax.random.uniform(k1, (n_embd, hidden), dtype, minval=-lim1, maxval=lim1)
    b1 = jax.random.uniform(k2, (1, hidden), dtype, minval=-lim1, maxval=lim1)
    w2 = jax.random.uniform(k3, (hidden, n_embd), dtype, minval=-lim2, maxval=lim2)
    b2 = jax.random.uniform(k4, (1, n_embd), dtype, minval=-lim2, maxval=lim2)
    return w1, b1, w2, b2


def feed_forward(x, params, *, training=False, dropout_rate=DROPOUT, seed=0,
                 compute_dtype=jnp.bfloat16):
    """x: (B, T, C).  Returns (B, T, C) in x.dtype."""
    B, T, C = x.shape
    w1, b1, w2, b2 = params
    H = w1.shape[1]
    M = B * T

    tile_default, vmem_limit, on_tpu = _tpu_config()
    Cp = _round_up(C, 128)                 # lane-dense output / MXU-friendly K
    Hp = _round_up(H, 128)
    TILE_M = min(tile_default, _round_up(M, 8))
    Mp = _round_up(M, TILE_M)

    # Pad to tile boundaries and cast matmul operands to the compute dtype
    # once, in the wrapper (zero padding is exact for this FFN).
    x2 = _pad2(x.reshape(M, C), Mp, Cp).astype(compute_dtype)
    w1p = _pad2(w1, Cp, Hp).astype(compute_dtype)
    b1p = _pad2(b1, 1, Hp).astype(jnp.float32)
    w2p = _pad2(w2, Hp, Cp).astype(compute_dtype)
    b2p = _pad2(b2, 1, Cp).astype(jnp.float32)
    seed_arr = jnp.asarray([seed], dtype=jnp.int32)

    apply_dropout = bool(training) and float(dropout_rate) > 0.0
    kernel = functools.partial(ffn_kernel,
                               dropout_rate=float(dropout_rate),
                               apply_dropout=apply_dropout)

    grid_spec = pltpu.PrefetchScalarGridSpec(
        num_scalar_prefetch=1,                       # seed lives in SMEM
        grid=(pl.cdiv(Mp, TILE_M),),
        in_specs=[
            pl.BlockSpec((TILE_M, Cp), lambda i, s: (i, 0)),   # x tile (pipelined)
            pl.BlockSpec((Cp, Hp), lambda i, s: (0, 0)),       # w1 (resident)
            pl.BlockSpec((1, Hp), lambda i, s: (0, 0)),        # b1 (resident)
            pl.BlockSpec((Hp, Cp), lambda i, s: (0, 0)),       # w2 (resident)
            pl.BlockSpec((1, Cp), lambda i, s: (0, 0)),        # b2 (resident)
        ],
        out_specs=pl.BlockSpec((TILE_M, Cp), lambda i, s: (i, 0)),
    )

    compiler_params = None
    if on_tpu:
        compiler_params = pltpu.CompilerParams(
            dimension_semantics=("parallel",),       # shard M across TCs (v7x)
            vmem_limit_bytes=vmem_limit,
        )

    y = pl.pallas_call(
        kernel,
        grid_spec=grid_spec,
        out_shape=jax.ShapeDtypeStruct((Mp, Cp), x.dtype),
        compiler_params=compiler_params,
    )(seed_arr, x2, w1p, b1p, w2p, b2p)

    return y[:M, :C].reshape(B, T, C)


def feed_forward_ref(x, params):
    """Pure-JAX f32 reference (eval mode: dropout = identity)."""
    w1, b1, w2, b2 = params
    h = jnp.maximum(x @ w1 + b1[0], 0.0)
    return h @ w2 + b2[0]


# ----------------------------------------------------------------------------
# demo / self-check
# ----------------------------------------------------------------------------
if __name__ == "__main__":
    key = jax.random.PRNGKey(0)
    k_param, k_x = jax.random.split(key)

    B, T, C = 2, 8, N_EMBD          # small batch/seq, real n_embd = 256
    params = init_params(k_param, C)
    x = jax.random.normal(k_x, (B, T, C), dtype=jnp.float32)

    y_ref = feed_forward_ref(x, params)

    # Eval mode, f32 compute: must match the reference tightly.
    y_f32 = jax.block_until_ready(
        feed_forward(x, params, training=False, compute_dtype=jnp.float32))
    assert y_f32.shape == (B, T, C)
    assert jnp.allclose(y_f32, y_ref, atol=1e-4, rtol=1e-4), "f32 eval mismatch"

    # Eval mode, default bf16 I/O (bandwidth-optimized): loose check.
    y_bf16 = jax.block_until_ready(feed_forward(x, params, training=False))
    assert y_bf16.shape == (B, T, C)
    assert jnp.allclose(y_bf16, y_ref, atol=1e-1, rtol=1e-1), "bf16 eval mismatch"

    # Training mode: inverted dropout, seeded per-call, per-element hash.
    y_tr = jax.block_until_ready(
        feed_forward(x, params, training=True, seed=1234,
                     compute_dtype=jnp.float32))
    assert y_tr.shape == (B, T, C)
    assert bool(jnp.all(jnp.isfinite(y_tr)))
    zero_frac = float(jnp.mean((y_tr == 0.0).astype(jnp.float32)))
    assert 0.05 < zero_frac < 0.40, f"dropout fraction off: {zero_frac}"

    print("KERNEL_OK")
</pallas_src>

<mosaic_0001>
module attributes {stable_mosaic.version = 11 : i64} {
  func.func @ffn_kernel(%arg0: i32, %arg1: memref<1xi32, #tpu.memory_space<smem>>, %arg2: memref<16x256xf32, #tpu.memory_space<vmem>>, %arg3: memref<256x1024xf32, #tpu.memory_space<vmem>>, %arg4: memref<1x1024xf32, #tpu.memory_space<vmem>>, %arg5: memref<1024x256xf32, #tpu.memory_space<vmem>>, %arg6: memref<1x256xf32, #tpu.memory_space<vmem>>, %arg7: memref<16x256xf32, #tpu.memory_space<vmem>>) attributes {dimension_semantics = [#tpu.dimension_semantics<arbitrary>], iteration_bounds = array<i64: 1>, scalar_prefetch = 1 : i64, scratch_operands = 0 : i64, tpu.core_type = #tpu.core_type<tc>, window_params = [{transform_indices = @transform_0, window_bounds = array<i64: 16, 256>}, {pipeline_mode = #tpu.pipeline_mode<synchronous>, transform_indices = @transform_1, window_bounds = array<i64: 256, 1024>}, {pipeline_mode = #tpu.pipeline_mode<synchronous>, transform_indices = @transform_2, window_bounds = array<i64: 1, 1024>}, {pipeline_mode = #tpu.pipeline_mode<synchronous>, transform_indices = @transform_3, window_bounds = array<i64: 1024, 256>}, {pipeline_mode = #tpu.pipeline_mode<synchronous>, transform_indices = @transform_4, window_bounds = array<i64: 1, 256>}, {transform_indices = @transform_5, window_bounds = array<i64: 16, 256>}]} {
    %c0 = arith.constant 0 : index
    %c0_0 = arith.constant 0 : index
    %0 = vector.load %arg2[%c0, %c0_0] : memref<16x256xf32, #tpu.memory_space<vmem>>, vector<16x256xf32>
    %c0_1 = arith.constant 0 : index
    %c0_2 = arith.constant 0 : index
    %1 = vector.load %arg3[%c0_1, %c0_2] : memref<256x1024xf32, #tpu.memory_space<vmem>>, vector<256x1024xf32>
    %cst = arith.constant dense<0.000000e+00> : vector<16x1024xf32>
    %2 = tpu.matmul %0, %1, %cst {dimension_numbers = #tpu.dot_dimension_numbers<[1], [0], [0], [1], [0, 0, 1, 1], [], []>} : vector<16x256xf32>, vector<256x1024xf32>, vector<16x1024xf32> -> vector<16x1024xf32>
    %c0_3 = arith.constant 0 : index
    %c0_4 = arith.constant 0 : index
    %3 = vector.load %arg4[%c0_3, %c0_4] : memref<1x1024xf32, #tpu.memory_space<vmem>>, vector<1x1024xf32>
    %4 = vector.broadcast %3 : vector<1x1024xf32> to vector<16x1024xf32>
    %5 = arith.addf %2, %4 : vector<16x1024xf32>
    %cst_5 = arith.constant 0.000000e+00 : f32
    %6 = vector.broadcast %cst_5 : f32 to vector<16x1024xf32>
    %7 = arith.maximumf %5, %6 : vector<16x1024xf32>
    %c0_6 = arith.constant 0 : index
    %c0_7 = arith.constant 0 : index
    %8 = vector.load %arg5[%c0_6, %c0_7] : memref<1024x256xf32, #tpu.memory_space<vmem>>, vector<1024x256xf32>
    %cst_8 = arith.constant dense<0.000000e+00> : vector<16x256xf32>
    %9 = tpu.matmul %7, %8, %cst_8 {dimension_numbers = #tpu.dot_dimension_numbers<[1], [0], [0], [1], [0, 0, 1, 1], [], []>} : vector<16x1024xf32>, vector<1024x256xf32>, vector<16x256xf32> -> vector<16x256xf32>
    %c0_9 = arith.constant 0 : index
    %c0_10 = arith.constant 0 : index
    %10 = vector.load %arg6[%c0_9, %c0_10] : memref<1x256xf32, #tpu.memory_space<vmem>>, vector<1x256xf32>
    %11 = vector.broadcast %10 : vector<1x256xf32> to vector<16x256xf32>
    %12 = arith.addf %9, %11 : vector<16x256xf32>
    %c0_11 = arith.constant 0 : index
    %c0_12 = arith.constant 0 : index
    %13 = vector.load %arg7[%c0_11, %c0_12] : memref<16x256xf32, #tpu.memory_space<vmem>>, vector<16x256xf32>
    tpu.vector_store %arg7[%c0_11, %c0_12], %12 {strides = array<i32>} : memref<16x256xf32, #tpu.memory_space<vmem>>, vector<16x256xf32>,
    return
  }
  func.func @transform_0(%arg0: i32, %arg1: memref<1xi32, #tpu.memory_space<smem>>) -> (i32, i32) {
    %c0_i32 = arith.constant 0 : i32
    %c0_i32_0 = arith.constant 0 : i32
    return %arg0, %c0_i32 : i32, i32
  }
  func.func @transform_1(%arg0: i32, %arg1: memref<1xi32, #tpu.memory_space<smem>>) -> (i32, i32) {
    %c0_i32 = arith.constant 0 : i32
    %c0_i32_0 = arith.constant 0 : i32
    %c0_i32_1 = arith.constant 0 : i32
    return %c0_i32, %c0_i32_0 : i32, i32
  }
  func.func @transform_2(%arg0: i32, %arg1: memref<1xi32, #tpu.memory_space<smem>>) -> (i32, i32) {
    %c0_i32 = arith.constant 0 : i32
    %c0_i32_0 = arith.constant 0 : i32
    %c0_i32_1 = arith.constant 0 : i32
    return %c0_i32, %c0_i32_0 : i32, i32
  }
  func.func @transform_3(%arg0: i32, %arg1: memref<1xi32, #tpu.memory_space<smem>>) -> (i32, i32) {
    %c0_i32 = arith.constant 0 : i32
    %c0_i32_0 = arith.constant 0 : i32
    %c0_i32_1 = arith.constant 0 : i32
    return %c0_i32, %c0_i32_0 : i32, i32
  }
  func.func @transform_4(%arg0: i32, %arg1: memref<1xi32, #tpu.memory_space<smem>>) -> (i32, i32) {
    %c0_i32 = arith.constant 0 : i32
    %c0_i32_0 = arith.constant 0 : i32
    %c0_i32_1 = arith.constant 0 : i32
    return %c0_i32, %c0_i32_0 : i32, i32
  }
  func.func @transform_5(%arg0: i32, %arg1: memref<1xi32, #tpu.memory_space<smem>>) -> (i32, i32) {
    %c0_i32 = arith.constant 0 : i32
    %c0_i32_0 = arith.constant 0 : i32
    return %arg0, %c0_i32 : i32, i32
  }
}

</mosaic_0001>

<llo_original>
// kernel: tpu_custom_call.1
$region0: #{tpu_custom_call.1}
  #allocation0 [shape = 'u32[]', space=smem, size = 0x4, offset = 0x4, fixed_abs, tag = 'smem constant byte address 0x4 - core index']
  #allocation1 [shape = 'u32[144,128]{1,0:T(1,128)}', space=vmem, size = 0x12000, scoped, tag = 'internal scratch']
  #allocation2 [shape = 's32[1]{0}', space=sflag, size = 0x4, scoped, tag = 'scoped memory for tpu_custom_call.1']
  #allocation3 [shape = 's32[1]{0:T(128)S(6)}', space=smem, size = 0x200, scoped, tag = 'prefetched SMEM operand 0']
  %s0 = inlined_call_operand.<no memory space> [shape: s32[1], index: 0, kind: input, shape index: {}]
  %s1 = inlined_call_operand.hbm [shape: f32[16,256], index: 1, kind: input, shape index: {}]
  %s2 = inlined_call_operand.hbm [shape: f32[256,1024], index: 2, kind: input, shape index: {}]
  %s3 = inlined_call_operand.hbm [shape: f32[1,1024], index: 3, kind: input, shape index: {}]
  %s4 = inlined_call_operand.hbm [shape: f32[1024,256], index: 4, kind: input, shape index: {}]
  %s5 = inlined_call_operand.vmem [shape: f32[1,256], index: 5, kind: input, shape index: {}]
  %s6 = inlined_call_operand.hbm [shape: f32[16,256], index: 6, kind: output, shape index: {}]
  %s7 = sld [smem:[#allocation0]]
  $region46: #{tpu_custom_call.1} parent=0
    _
  %s9 = ssub.s32 1, %s7
  %s10 = scalar_select 0, %s9, %s7
  %11 = sst [smem:[#allocation3]] %s0
  $region1: #{tpu_custom_call.1} parent=0
    #allocation4 [shape = 'u8[16384]{0}', space=vmem, size = 0x4000, scoped, tag = 'input window, operand 1, single buffered']
    #allocation5 [shape = 's32[1]{0}', space=sflag, size = 0x4, scoped, tag = 'scoped memory for tpu_custom_call.1']
    #allocation6 [shape = 's32[1]{0}', space=sflag, size = 0x4, scoped, tag = 'scoped memory for tpu_custom_call.1']
    #allocation7 [shape = 'u8[1048576]{0}', space=vmem, size = 0x100000, scoped, tag = 'input window, operand 2, single buffered']
    #allocation8 [shape = 's32[1]{0}', space=sflag, size = 0x4, scoped, tag = 'scoped memory for tpu_custom_call.1']
    #allocation9 [shape = 'u8[4096]{0}', space=vmem, size = 0x1000, scoped, tag = 'input window, operand 3, single buffered']
    #allocation10 [shape = 'u8[1048576]{0}', space=vmem, size = 0x100000, scoped, tag = 'input window, operand 4, single buffered']
    #allocation11 [shape = 's32[1]{0}', space=sflag, size = 0x4, scoped, tag = 'scoped memory for tpu_custom_call.1']
    #allocation12 [shape = 'u8[16384]{0}', space=vmem, size = 0x4000, scoped, tag = 'output window, operand 0, single buffered']
    %12 = vsyncpa [#allocation5], 0
    %13 = vsyncpa [#allocation8], 0
    %14 = vsyncpa [#allocation11], 0
    %15 = vsyncpa [#allocation6], 0
    // Predicated region
    $region2: #{tpu_custom_call.1} parent=1 // pred_check
      _
    $region3: #{tpu_custom_call.1} parent=1 // pred_check_branch
      %17 = sbr.rel (0) target = $region5
    $region4: #{tpu_custom_call.1} parent=1 // pred_region
      %s19 = ssub.s32 512, 512
      %20 = vsyncadd [#allocation5], %s19
      %s21 = sshll.u32 [#allocation4], 4
      %s22 = int_to_ptr.vmem [resolvable:$true] %s21
      %27 = dma.hbm_to_vmem [thread:$0]  %s1, 512, %s22, [#allocation5], 256, 256, 16
    $region5: #{tpu_custom_call.1} parent=1 // pred_fallthru
      _
    // Predicated region
    $region6: #{tpu_custom_call.1} parent=1 // pred_check
      _
    $region7: #{tpu_custom_call.1} parent=1 // pred_check_branch
      %29 = sbr.rel (0) target = $region9
    $region8: #{tpu_custom_call.1} parent=1 // pred_region
      %s31 = ssub.s32 32768, 32768
      %32 = vsyncadd [#allocation8], %s31
      %s33 = sshll.u32 [#allocation7], 4
      %s34 = int_to_ptr.vmem [resolvable:$true] %s33
      %39 = dma.hbm_to_vmem [thread:$0]  %s2, 32768, %s34, [#allocation8], 1024, 1024, 64
    $region9: #{tpu_custom_call.1} parent=1 // pred_fallthru
      _
    // Predicated region
    $region10: #{tpu_custom_call.1} parent=1 // pred_check
      _
    $region11: #{tpu_custom_call.1} parent=1 // pred_check_branch
      %41 = sbr.rel (0) target = $region13
    $region12: #{tpu_custom_call.1} parent=1 // pred_region
      %s43 = ssub.s32 128, 128
      %44 = vsyncadd [#allocation8], %s43
      %s46 = sshll.u32 [#allocation9], 4
      %s47 = int_to_ptr.vmem [resolvable:$true] %s46
      %49 = dma.hbm_to_vmem [thread:$0]  %s3, 128, %s47, [#allocation8]
    $region13: #{tpu_custom_call.1} parent=1 // pred_fallthru
      _
    // Predicated region
    $region14: #{tpu_custom_call.1} parent=1 // pred_check
      _
    $region15: #{tpu_custom_call.1} parent=1 // pred_check_branch
      %51 = sbr.rel (0) target = $region17
    $region16: #{tpu_custom_call.1} parent=1 // pred_region
      %s53 = ssub.s32 32768, 32768
      %54 = vsyncadd [#allocation11], %s53
      %s55 = sshll.u32 [#allocation10], 4
      %s56 = int_to_ptr.vmem [resolvable:$true] %s55
      %61 = dma.hbm_to_vmem [thread:$0]  %s4, 32768, %s56, [#allocation11], 256, 256, 16
    $region17: #{tpu_custom_call.1} parent=1 // pred_fallthru
      _
    // Predicated region
    $region18: #{tpu_custom_call.1} parent=1 // pred_check
      _
    $region19: #{tpu_custom_call.1} parent=1 // pred_check_branch
      %63 = sbr.rel (0) target = $region21
    $region20: #{tpu_custom_call.1} parent=1 // pred_region
      _
    $region21: #{tpu_custom_call.1} parent=1 // pred_fallthru
      _
    // Predicated region
    $region22: #{tpu_custom_call.1} parent=1 // pred_check
      _
    $region23: #{tpu_custom_call.1} parent=1 // pred_check_branch
      %65 = sbr.rel (0) target = $region25
    $region24: #{tpu_custom_call.1} parent=1 // pred_region
      %66 = dma.done [#allocation5], 512
    $region25: #{tpu_custom_call.1} parent=1 // pred_fallthru
      _
    // Predicated region
    $region26: #{tpu_custom_call.1} parent=1 // pred_check
      _
    $region27: #{tpu_custom_call.1} parent=1 // pred_check_branch
      %68 = sbr.rel (0) target = $region29
    $region28: #{tpu_custom_call.1} parent=1 // pred_region
      %69 = dma.done [#allocation8], 32768
    $region29: #{tpu_custom_call.1} parent=1 // pred_fallthru
      _
    // Predicated region
    $region30: #{tpu_custom_call.1} parent=1 // pred_check
      _
    $region31: #{tpu_custom_call.1} parent=1 // pred_check_branch
      %71 = sbr.rel (0) target = $region33
    $region32: #{tpu_custom_call.1} parent=1 // pred_region
      %72 = dma.done [#allocation8], 128
    $region33: #{tpu_custom_call.1} parent=1 // pred_fallthru
      _
    // Predicated region
    $region34: #{tpu_custom_call.1} parent=1 // pred_check
      _
    $region35: #{tpu_custom_call.1} parent=1 // pred_check_branch
      %74 = sbr.rel (0) target = $region37
    $region36: #{tpu_custom_call.1} parent=1 // pred_region
      %75 = dma.done [#allocation11], 32768
    $region37: #{tpu_custom_call.1} parent=1 // pred_fallthru
      _
    %v76 = vld [vmem:[#allocation4] sm:$0xff]
    %v77 = vld [vmem:[#allocation4 + $0x8] sm:$0xff]
    %v78 = vld [vmem:[#allocation4 + $0x10] sm:$0xff]
    %v79 = vld [vmem:[#allocation4 + $0x18] sm:$0xff]
    %v80 = vld [vmem:[#allocation7] sm:$0xff]
    %v81 = vld [vmem:[#allocation7 + $0x8] sm:$0xff]
    %v82 = vld [vmem:[#allocation7 + $0x10] sm:$0xff]
    %v83 = vld [vmem:[#allocation7 + $0x18] sm:$0xff]
    %v84 = vld [vmem:[#allocation7 + $0x20] sm:$0xff]
    %v85 = vld [vmem:[#allocation7 + $0x28] sm:$0xff]
    %v86 = vld [vmem:[#allocation7 + $0x30] sm:$0xff]
    %v87 = vld [vmem:[#allocation7 + $0x38] sm:$0xff]
    %v88 = vld [vmem:[#allocation7 + $0x40] sm:$0xff]
    %v89 = vld [vmem:[#allocation7 + $0x48] sm:$0xff]
    %v90 = vld [vmem:[#allocation7 + $0x50] sm:$0xff]
    %v91 = vld [vmem:[#allocation7 + $0x58] sm:$0xff]
    %v92 = vld [vmem:[#allocation7 + $0x60] sm:$0xff]
    %v93 = vld [vmem:[#allocation7 + $0x68] sm:$0xff]
    %v94 = vld [vmem:[#allocation7 + $0x70] sm:$0xff]
    %v95 = vld [vmem:[#allocation7 + $0x78] sm:$0xff]
    %v96 = vld [vmem:[#allocation7 + $0x80] sm:$0xff]
    %v97 = vld [vmem:[#allocation7 + $0x88] sm:$0xff]
    %v98 = vld [vmem:[#allocation7 + $0x90] sm:$0xff]
    %v99 = vld [vmem:[#allocation7 + $0x98] sm:$0xff]
    %v100 = vld [vmem:[#allocation7 + $0xa0] sm:$0xff]
    %v101 = vld [vmem:[#allocation7 + $0xa8] sm:$0xff]
    %v102 = vld [vmem:[#allocation7 + $0xb0] sm:$0xff]
    %v103 = vld [vmem:[#allocation7 + $0xb8] sm:$0xff]
    %v104 = vld [vmem:[#allocation7 + $0xc0] sm:$0xff]
    %v105 = vld [vmem:[#allocation7 + $0xc8] sm:$0xff]
    %v106 = vld [vmem:[#allocation7 + $0xd0] sm:$0xff]
    %v107 = vld [vmem:[#allocation7 + $0xd8] sm:$0xff]
    %v108 = vld [vmem:[#allocation7 + $0xe0] sm:$0xff]
    %v109 = vld [vmem:[#allocation7 + $0xe8] sm:$0xff]
    %v110 = vld [vmem:[#allocation7 + $0xf0] sm:$0xff]
    %v111 = vld [vmem:[#allocation7 + $0xf8] sm:$0xff]
    %v112 = vld [vmem:[#allocation7 + $0x100] sm:$0xff]
    %v113 = vld [vmem:[#allocation7 + $0x108] sm:$0xff]
    %v114 = vld [vmem:[#allocation7 + $0x110] sm:$0xff]
    %v115 = vld [vmem:[#allocation7 + $0x118] sm:$0xff]
    %v116 = vld [vmem:[#allocation7 + $0x120] sm:$0xff]
    %v117 = vld [vmem:[#allocation7 + $0x128] sm:$0xff]
    %v118 = vld [vmem:[#allocation7 + $0x130] sm:$0xff]
    %v119 = vld [vmem:[#allocation7 + $0x138] sm:$0xff]
    %v120 = vld [vmem:[#allocation7 + $0x140] sm:$0xff]
    %v121 = vld [vmem:[#allocation7 + $0x148] sm:$0xff]
    %v122 = vld [vmem:[#allocation7 + $0x150] sm:$0xff]
    %v123 = vld [vmem:[#allocation7 + $0x158] sm:$0xff]
    %v124 = vld [vmem:[#allocation7 + $0x160] sm:$0xff]
    %v125 = vld [vmem:[#allocation7 + $0x168] sm:$0xff]
    %v126 = vld [vmem:[#allocation7 + $0x170] sm:$0xff]
    %v127 = vld [vmem:[#allocation7 + $0x178] sm:$0xff]
    %v128 = vld [vmem:[#allocation7 + $0x180] sm:$0xff]
    %v129 = vld [vmem:[#allocation7 + $0x188] sm:$0xff]
    %v130 = vld [vmem:[#allocation7 + $0x190] sm:$0xff]
    %v131 = vld [vmem:[#allocation7 + $0x198] sm:$0xff]
    %v132 = vld [vmem:[#allocation7 + $0x1a0] sm:$0xff]
    %v133 = vld [vmem:[#allocation7 + $0x1a8] sm:$0xff]
    %v134 = vld [vmem:[#allocation7 + $0x1b0] sm:$0xff]
    %v135 = vld [vmem:[#allocation7 + $0x1b8] sm:$0xff]
    %v136 = vld [vmem:[#allocation7 + $0x1c0] sm:$0xff]
    %v137 = vld [vmem:[#allocation7 + $0x1c8] sm:$0xff]
    %v138 = vld [vmem:[#allocation7 + $0x1d0] sm:$0xff]
    %v139 = vld [vmem:[#allocation7 + $0x1d8] sm:$0xff]
    %v140 = vld [vmem:[#allocation7 + $0x1e0] sm:$0xff]
    %v141 = vld [vmem:[#allocation7 + $0x1e8] sm:$0xff]
    %v142 = vld [vmem:[#allocation7 + $0x1f0] sm:$0xff]
    %v143 = vld [vmem:[#allocation7 + $0x1f8] sm:$0xff]
    %v144 = vld [vmem:[#allocation7 + $0x200] sm:$0xff]
    %v145 = vld [vmem:[#allocation7 + $0x208] sm:$0xff]
    %v146 = vld [vmem:[#allocation7 + $0x210] sm:$0xff]
    %v147 = vld [vmem:[#allocation7 + $0x218] sm:$0xff]
    %v148 = vld [vmem:[#allocation7 + $0x220] sm:$0xff]
    %v149 = vld [vmem:[#allocation7 + $0x228] sm:$0xff]
    %v150 = vld [vmem:[#allocation7 + $0x230] sm:$0xff]
    %v151 = vld [vmem:[#allocation7 + $0x238] sm:$0xff]
    %v152 = vld [vmem:[#allocation7 + $0x240] sm:$0xff]
    %v153 = vld [vmem:[#allocation7 + $0x248] sm:$0xff]
    %v154 = vld [vmem:[#allocation7 + $0x250] sm:$0xff]
    %v155 = vld [vmem:[#allocation7 + $0x258] sm:$0xff]
    %v156 = vld [vmem:[#allocation7 + $0x260] sm:$0xff]
    %v157 = vld [vmem:[#allocation7 + $0x268] sm:$0xff]
    %v158 = vld [vmem:[#allocation7 + $0x270] sm:$0xff]
    %v159 = vld [vmem:[#allocation7 + $0x278] sm:$0xff]
    %v160 = vld [vmem:[#allocation7 + $0x280] sm:$0xff]
    %v161 = vld [vmem:[#allocation7 + $0x288] sm:$0xff]
    %v162 = vld [vmem:[#allocation7 + $0x290] sm:$0xff]
    %v163 = vld [vmem:[#allocation7 + $0x298] sm:$0xff]
    %v164 = vld [vmem:[#allocation7 + $0x2a0] sm:$0xff]
    %v165 = vld [vmem:[#allocation7 + $0x2a8] sm:$0xff]
    %v166 = vld [vmem:[#allocation7 + $0x2b0] sm:$0xff]
    %v167 = vld [vmem:[#allocation7 + $0x2b8] sm:$0xff]
    %v168 = vld [vmem:[#allocation7 + $0x2c0] sm:$0xff]
    %v169 = vld [vmem:[#allocation7 + $0x2c8] sm:$0xff]
    %v170 = vld [vmem:[#allocation7 + $0x2d0] sm:$0xff]
    %v171 = vld [vmem:[#allocation7 + $0x2d8] sm:$0xff]
    %v172 = vld [vmem:[#allocation7 + $0x2e0] sm:$0xff]
    %v173 = vld [vmem:[#allocation7 + $0x2e8] sm:$0xff]
    %v174 = vld [vmem:[#allocation7 + $0x2f0] sm:$0xff]
    %v175 = vld [vmem:[#allocation7 + $0x2f8] sm:$0xff]
    %v176 = vld [vmem:[#allocation7 + $0x300] sm:$0xff]
    %v177 = vld [vmem:[#allocation7 + $0x308] sm:$0xff]
    %v178 = vld [vmem:[#allocation7 + $0x310] sm:$0xff]
    %v179 = vld [vmem:[#allocation7 + $0x318] sm:$0xff]
    %v180 = vld [vmem:[#allocation7 + $0x320] sm:$0xff]
    %v181 = vld [vmem:[#allocation7 + $0x328] sm:$0xff]
    %v182 = vld [vmem:[#allocation7 + $0x330] sm:$0xff]
    %v183 = vld [vmem:[#allocation7 + $0x338] sm:$0xff]
    %v184 = vld [vmem:[#allocation7 + $0x340] sm:$0xff]
    %v185 = vld [vmem:[#allocation7 + $0x348] sm:$0xff]
    %v186 = vld [vmem:[#allocation7 + $0x350] sm:$0xff]
    %v187 = vld [vmem:[#allocation7 + $0x358] sm:$0xff]
    %v188 = vld [vmem:[#allocation7 + $0x360] sm:$0xff]
    %v189 = vld [vmem:[#allocation7 + $0x368] sm:$0xff]
    %v190 = vld [vmem:[#allocation7 + $0x370] sm:$0xff]
    %v191 = vld [vmem:[#allocation7 + $0x378] sm:$0xff]
    %v192 = vld [vmem:[#allocation7 + $0x380] sm:$0xff]
    %v193 = vld [vmem:[#allocation7 + $0x388] sm:$0xff]
    %v194 = vld [vmem:[#allocation7 + $0x390] sm:$0xff]
    %v195 = vld [vmem:[#allocation7 + $0x398] sm:$0xff]
    %v196 = vld [vmem:[#allocation7 + $0x3a0] sm:$0xff]
    %v197 = vld [vmem:[#allocation7 + $0x3a8] sm:$0xff]
    %v198 = vld [vmem:[#allocation7 + $0x3b0] sm:$0xff]
    %v199 = vld [vmem:[#allocation7 + $0x3b8] sm:$0xff]
    %v200 = vld [vmem:[#allocation7 + $0x3c0] sm:$0xff]
    %v201 = vld [vmem:[#allocation7 + $0x3c8] sm:$0xff]
    %v202 = vld [vmem:[#allocation7 + $0x3d0] sm:$0xff]
    %v203 = vld [vmem:[#allocation7 + $0x3d8] sm:$0xff]
    %v204 = vld [vmem:[#allocation7 + $0x3e0] sm:$0xff]
    %v205 = vld [vmem:[#allocation7 + $0x3e8] sm:$0xff]
    %v206 = vld [vmem:[#allocation7 + $0x3f0] sm:$0xff]
    %v207 = vld [vmem:[#allocation7 + $0x3f8] sm:$0xff]
    %v208 = vld [vmem:[#allocation7 + $0x400] sm:$0xff]
    %v209 = vld [vmem:[#allocation7 + $0x408] sm:$0xff]
    %v210 = vld [vmem:[#allocation7 + $0x410] sm:$0xff]
    %v211 = vld [vmem:[#allocation7 + $0x418] sm:$0xff]
    %v212 = vld [vmem:[#allocation7 + $0x420] sm:$0xff]
    %v213 = vld [vmem:[#allocation7 + $0x428] sm:$0xff]
    %v214 = vld [vmem:[#allocation7 + $0x430] sm:$0xff]
    %v215 = vld [vmem:[#allocation7 + $0x438] sm:$0xff]
    %v216 = vld [vmem:[#allocation7 + $0x440] sm:$0xff]
    %v217 = vld [vmem:[#allocation7 + $0x448] sm:$0xff]
    %v218 = vld [vmem:[#allocation7 + $0x450] sm:$0xff]
    %v219 = vld [vmem:[#allocation7 + $0x458] sm:$0xff]
    %v220 = vld [vmem:[#allocation7 + $0x460] sm:$0xff]
    %v221 = vld [vmem:[#allocation7 + $0x468] sm:$0xff]
    %v222 = vld [vmem:[#allocation7 + $0x470] sm:$0xff]
    %v223 = vld [vmem:[#allocation7 + $0x478] sm:$0xff]
    %v224 = vld [vmem:[#allocation7 + $0x480] sm:$0xff]
    %v225 = vld [vmem:[#allocation7 + $0x488] sm:$0xff]
    %v226 = vld [vmem:[#allocation7 + $0x490] sm:$0xff]
    %v227 = vld [vmem:[#allocation7 + $0x498] sm:$0xff]
    %v228 = vld [vmem:[#allocation7 + $0x4a0] sm:$0xff]
    %v229 = vld [vmem:[#allocation7 + $0x4a8] sm:$0xff]
    %v230 = vld [vmem:[#allocation7 + $0x4b0] sm:$0xff]
    %v231 = vld [vmem:[#allocation7 + $0x4b8] sm:$0xff]
    %v232 = vld [vmem:[#allocation7 + $0x4c0] sm:$0xff]
    %v233 = vld [vmem:[#allocation7 + $0x4c8] sm:$0xff]
    %v234 = vld [vmem:[#allocation7 + $0x4d0] sm:$0xff]
    %v235 = vld [vmem:[#allocation7 + $0x4d8] sm:$0xff]
    %v236 = vld [vmem:[#allocation7 + $0x4e0] sm:$0xff]
    %v237 = vld [vmem:[#allocation7 + $0x4e8] sm:$0xff]
    %v238 = vld [vmem:[#allocation7 + $0x4f0] sm:$0xff]
    %v239 = vld [vmem:[#allocation7 + $0x4f8] sm:$0xff]
    %v240 = vld [vmem:[#allocation7 + $0x500] sm:$0xff]
    %v241 = vld [vmem:[#allocation7 + $0x508] sm:$0xff]
    %v242 = vld [vmem:[#allocation7 + $0x510] sm:$0xff]
    %v243 = vld [vmem:[#allocation7 + $0x518] sm:$0xff]
    %v244 = vld [vmem:[#allocation7 + $0x520] sm:$0xff]
    %v245 = vld [vmem:[#allocation7 + $0x528] sm:$0xff]
    %v246 = vld [vmem:[#allocation7 + $0x530] sm:$0xff]
    %v247 = vld [vmem:[#allocation7 + $0x538] sm:$0xff]
    %v248 = vld [vmem:[#allocation7 + $0x540] sm:$0xff]
    %v249 = vld [vmem:[#allocation7 + $0x548] sm:$0xff]
    %v250 = vld [vmem:[#allocation7 + $0x550] sm:$0xff]
    %v251 = vld [vmem:[#allocation7 + $0x558] sm:$0xff]
    %v252 = vld [vmem:[#allocation7 + $0x560] sm:$0xff]
    %v253 = vld [vmem:[#allocation7 + $0x568] sm:$0xff]
    %v254 = vld [vmem:[#allocation7 + $0x570] sm:$0xff]
    %v255 = vld [vmem:[#allocation7 + $0x578] sm:$0xff]
    %v256 = vld [vmem:[#allocation7 + $0x580] sm:$0xff]
    %v257 = vld [vmem:[#allocation7 + $0x588] sm:$0xff]
    %v258 = vld [vmem:[#allocation7 + $0x590] sm:$0xff]
    %v259 = vld [vmem:[#allocation7 + $0x598] sm:$0xff]
    %v260 = vld [vmem:[#allocation7 + $0x5a0] sm:$0xff]
    %v261 = vld [vmem:[#allocation7 + $0x5a8] sm:$0xff]
    %v262 = vld [vmem:[#allocation7 + $0x5b0] sm:$0xff]
    %v263 = vld [vmem:[#allocation7 + $0x5b8] sm:$0xff]
    %v264 = vld [vmem:[#allocation7 + $0x5c0] sm:$0xff]
    %v265 = vld [vmem:[#allocation7 + $0x5c8] sm:$0xff]
    %v266 = vld [vmem:[#allocation7 + $0x5d0] sm:$0xff]
    %v267 = vld [vmem:[#allocation7 + $0x5d8] sm:$0xff]
    %v268 = vld [vmem:[#allocation7 + $0x5e0] sm:$0xff]
    %v269 = vld [vmem:[#allocation7 + $0x5e8] sm:$0xff]
    %v270 = vld [vmem:[#allocation7 + $0x5f0] sm:$0xff]
    %v271 = vld [vmem:[#allocation7 + $0x5f8] sm:$0xff]
    %v272 = vld [vmem:[#allocation7 + $0x600] sm:$0xff]
    %v273 = vld [vmem:[#allocation7 + $0x608] sm:$0xff]
    %v274 = vld [vmem:[#allocation7 + $0x610] sm:$0xff]
    %v275 = vld [vmem:[#allocation7 + $0x618] sm:$0xff]
    %v276 = vld [vmem:[#allocation7 + $0x620] sm:$0xff]
    %v277 = vld [vmem:[#allocation7 + $0x628] sm:$0xff]
    %v278 = vld [vmem:[#allocation7 + $0x630] sm:$0xff]
    %v279 = vld [vmem:[#allocation7 + $0x638] sm:$0xff]
    %v280 = vld [vmem:[#allocation7 + $0x640] sm:$0xff]
    %v281 = vld [vmem:[#allocation7 + $0x648] sm:$0xff]
    %v282 = vld [vmem:[#allocation7 + $0x650] sm:$0xff]
    %v283 = vld [vmem:[#allocation7 + $0x658] sm:$0xff]
    %v284 = vld [vmem:[#allocation7 + $0x660] sm:$0xff]
    %v285 = vld [vmem:[#allocation7 + $0x668] sm:$0xff]
    %v286 = vld [vmem:[#allocation7 + $0x670] sm:$0xff]
    %v287 = vld [vmem:[#allocation7 + $0x678] sm:$0xff]
    %v288 = vld [vmem:[#allocation7 + $0x680] sm:$0xff]
    %v289 = vld [vmem:[#allocation7 + $0x688] sm:$0xff]
    %v290 = vld [vmem:[#allocation7 + $0x690] sm:$0xff]
    %v291 = vld [vmem:[#allocation7 + $0x698] sm:$0xff]
    %v292 = vld [vmem:[#allocation7 + $0x6a0] sm:$0xff]
    %v293 = vld [vmem:[#allocation7 + $0x6a8] sm:$0xff]
    %v294 = vld [vmem:[#allocation7 + $0x6b0] sm:$0xff]
    %v295 = vld [vmem:[#allocation7 + $0x6b8] sm:$0xff]
    %v296 = vld [vmem:[#allocation7 + $0x6c0] sm:$0xff]
    %v297 = vld [vmem:[#allocation7 + $0x6c8] sm:$0xff]
    %v298 = vld [vmem:[#allocation7 + $0x6d0] sm:$0xff]
    %v299 = vld [vmem:[#allocation7 + $0x6d8] sm:$0xff]
    %v300 = vld [vmem:[#allocation7 + $0x6e0] sm:$0xff]
    %v301 = vld [vmem:[#allocation7 + $0x6e8] sm:$0xff]
    %v302 = vld [vmem:[#allocation7 + $0x6f0] sm:$0xff]
    %v303 = vld [vmem:[#allocation7 + $0x6f8] sm:$0xff]
    %v304 = vld [vmem:[#allocation7 + $0x700] sm:$0xff]
    %v305 = vld [vmem:[#allocation7 + $0x708] sm:$0xff]
    %v306 = vld [vmem:[#allocation7 + $0x710] sm:$0xff]
    %v307 = vld [vmem:[#allocation7 + $0x718] sm:$0xff]
    %v308 = vld [vmem:[#allocation7 + $0x720] sm:$0xff]
    %v309 = vld [vmem:[#allocation7 + $0x728] sm:$0xff]
    %v310 = vld [vmem:[#allocation7 + $0x730] sm:$0xff]
    %v311 = vld [vmem:[#allocation7 + $0x738] sm:$0xff]
    %v312 = vld [vmem:[#allocation7 + $0x740] sm:$0xff]
    %v313 = vld [vmem:[#allocation7 + $0x748] sm:$0xff]
    %v314 = vld [vmem:[#allocation7 + $0x750] sm:$0xff]
    %v315 = vld [vmem:[#allocation7 + $0x758] sm:$0xff]
    %v316 = vld [vmem:[#allocation7 + $0x760] sm:$0xff]
    %v317 = vld [vmem:[#allocation7 + $0x768] sm:$0xff]
    %v318 = vld [vmem:[#allocation7 + $0x770] sm:$0xff]
    %v319 = vld [vmem:[#allocation7 + $0x778] sm:$0xff]
    %v320 = vld [vmem:[#allocation7 + $0x780] sm:$0xff]
    %v321 = vld [vmem:[#allocation7 + $0x788] sm:$0xff]
    %v322 = vld [vmem:[#allocation7 + $0x790] sm:$0xff]
    %v323 = vld [vmem:[#allocation7 + $0x798] sm:$0xff]
    %v324 = vld [vmem:[#allocation7 + $0x7a0] sm:$0xff]
    %v325 = vld [vmem:[#allocation7 + $0x7a8] sm:$0xff]
    %v326 = vld [vmem:[#allocation7 + $0x7b0] sm:$0xff]
    %v327 = vld [vmem:[#allocation7 + $0x7b8] sm:$0xff]
    %v328 = vld [vmem:[#allocation7 + $0x7c0] sm:$0xff]
    %v329 = vld [vmem:[#allocation7 + $0x7c8] sm:$0xff]
    %v330 = vld [vmem:[#allocation7 + $0x7d0] sm:$0xff]
    %v331 = vld [vmem:[#allocation7 + $0x7d8] sm:$0xff]
    %v332 = vld [vmem:[#allocation7 + $0x7e0] sm:$0xff]
    %v333 = vld [vmem:[#allocation7 + $0x7e8] sm:$0xff]
    %v334 = vld [vmem:[#allocation7 + $0x7f0] sm:$0xff]
    %v335 = vld [vmem:[#allocation7 + $0x7f8] sm:$0xff]
    %v336 = vld [vmem:[#allocation9] sm:$0xff]
    %v338 = vlaneseq
    %v339 = vshrl.u32 %v338, 7
    %v340 = vsub.s32 0, %v339
    %v341 = vrot.slane %v336, %v340
    %v342 = vlaneseq
    %v343 = vshrl.u32 %v342, 7
    %v344 = vsub.s32 1, %v343
    %v345 = vrot.slane %v336, %v344
    %v346 = vlaneseq
    %v347 = vshrl.u32 %v346, 7
    %v348 = vsub.s32 2, %v347
    %v349 = vrot.slane %v336, %v348
    %v350 = vlaneseq
    %v351 = vshrl.u32 %v350, 7
    %v352 = vsub.s32 3, %v351
    %v353 = vrot.slane %v336, %v352
    %v354 = vlaneseq
    %v355 = vshrl.u32 %v354, 7
    %v356 = vsub.s32 4, %v355
    %v357 = vrot.slane %v336, %v356
    %v358 = vlaneseq
    %v359 = vshrl.u32 %v358, 7
    %v360 = vsub.s32 5, %v359
    %v361 = vrot.slane %v336, %v360
    %v362 = vlaneseq
    %v363 = vshrl.u32 %v362, 7
    %v364 = vsub.s32 6, %v363
    %v365 = vrot.slane %v336, %v364
    %v366 = vlaneseq
    %v367 = vshrl.u32 %v366, 7
    %v368 = vsub.s32 7, %v367
    %v369 = vrot.slane %v336, %v368
    %378 = vmatprep.subr.mxu0 %v201
    %379 = vmatpush1.msra.mxu0 %v200
    %380 = vmatprep.subr.mxu0 %v193
    %381 = vmatpush1.msra.mxu0 %v192
    %382 = vmatprep.subr.mxu0 %v185
    %383 = vmatpush1.msra.mxu0 %v184
    %384 = vmatprep.subr.mxu0 %v177
    %385 = vmatpush1.msra.mxu0 %v176
    %386 = vmatprep.subr.mxu0 %v169
    %387 = vmatpush1.msra.mxu0 %v168
    %388 = vmatprep.subr.mxu0 %v161
    %389 = vmatpush1.msra.mxu0 %v160
    %390 = vmatprep.subr.mxu0 %v153
    %391 = vmatpush1.msra.mxu0 %v152
    %392 = vmatprep.subr.mxu0 %v145
    %393 = vmatpush1.msra.mxu0 %v144
    %394 = vmatprep.subr.mxu0 %v137
    %395 = vmatpush1.msra.mxu0 %v136
    %396 = vmatprep.subr.mxu0 %v129
    %397 = vmatpush1.msra.mxu0 %v128
    %398 = vmatprep.subr.mxu0 %v121
    %399 = vmatpush1.msra.mxu0 %v120
    %400 = vmatprep.subr.mxu0 %v113
    %401 = vmatpush1.msra.mxu0 %v112
    %402 = vmatprep.subr.mxu0 %v105
    %403 = vmatpush1.msra.mxu0 %v104
    %404 = vmatprep.subr.mxu0 %v97
    %405 = vmatpush1.msra.mxu0 %v96
    %406 = vmatprep.subr.mxu0 %v89
    %407 = vmatpush1.msra.mxu0 %v88
    %408 = vmatprep.subr.mxu0 %v81
    %409 = vmatpush1.msra.mxu0 %v80
    %410 = vmatprep.subr.mxu0 %v329
    %411 = vmatpush2.msra.mxu0 %v328
    %412 = vmatprep.subr.mxu0 %v321
    %413 = vmatpush2.msra.mxu0 %v320
    %414 = vmatprep.subr.mxu0 %v313
    %415 = vmatpush2.msra.mxu0 %v312
    %416 = vmatprep.subr.mxu0 %v305
    %417 = vmatpush2.msra.mxu0 %v304
    %418 = vmatprep.subr.mxu0 %v297
    %419 = vmatpush2.msra.mxu0 %v296
    %420 = vmatprep.subr.mxu0 %v289
    %421 = vmatpush2.msra.mxu0 %v288
    %422 = vmatprep.subr.mxu0 %v281
    %423 = vmatpush2.msra.mxu0 %v280
    %424 = vmatprep.subr.mxu0 %v273
    %425 = vmatpush2.msra.mxu0 %v272
    %426 = vmatprep.subr.mxu0 %v265
    %427 = vmatpush2.msra.mxu0 %v264
    %428 = vmatprep.subr.mxu0 %v257
    %429 = vmatpush2.msra.mxu0 %v256
    %430 = vmatprep.subr.mxu0 %v249
    %431 = vmatpush2.msra.mxu0 %v248
    %432 = vmatprep.subr.mxu0 %v241
    %433 = vmatpush2.msra.mxu0 %v240
    %434 = vmatprep.subr.mxu0 %v233
    %435 = vmatpush2.msra.mxu0 %v232
    %436 = vmatprep.subr.mxu0 %v225
    %437 = vmatpush2.msra.mxu0 %v224
    %438 = vmatprep.subr.mxu0 %v217
    %439 = vmatpush2.msra.mxu0 %v216
    %440 = vmatprep.subr.mxu0 %v209
    %441 = vmatpush2.msra.mxu0 %v208
    %442 = vmatprep.mubr.f32.mxu0 %v77
    %443 = vmatmul.mubr.f32.gmra.mxu0 %v76
    %v444 = vpop.f32.mrf.mxu0
    %v445 = vadd.f32 %v341, %v444
    %v446 = vpop.f32.mrf.mxu0
    %v447 = vadd.f32 %v345, %v446
    %448 = vmatprep.mubr.f32.mxu0 %v79
    %449 = vmatmul.mubr.f32.gmra.mxu0 %v78
    %v450 = vpop.f32.mrf.mxu0
    %v451 = vadd.f32 %v341, %v450
    %v452 = vpop.f32.mrf.mxu0
    %v453 = vadd.f32 %v345, %v452
    %454 = vdwg.mxu0
    %455 = vmatprep.subr.mxu0 %v203
    %456 = vmatpush1.msra.mxu0 %v202
    %457 = vmatprep.subr.mxu0 %v195
    %458 = vmatpush1.msra.mxu0 %v194
    %459 = vmatprep.subr.mxu0 %v187
    %460 = vmatpush1.msra.mxu0 %v186
    %461 = vmatprep.subr.mxu0 %v179
    %462 = vmatpush1.msra.mxu0 %v178
    %463 = vmatprep.subr.mxu0 %v171
    %464 = vmatpush1.msra.mxu0 %v170
    %465 = vmatprep.subr.mxu0 %v163
    %466 = vmatpush1.msra.mxu0 %v162
    %467 = vmatprep.subr.mxu0 %v155
    %468 = vmatpush1.msra.mxu0 %v154
    %469 = vmatprep.subr.mxu0 %v147
    %470 = vmatpush1.msra.mxu0 %v146
    %471 = vmatprep.subr.mxu0 %v139
    %472 = vmatpush1.msra.mxu0 %v138
    %473 = vmatprep.subr.mxu0 %v131
    %474 = vmatpush1.msra.mxu0 %v130
    %475 = vmatprep.subr.mxu0 %v123
    %476 = vmatpush1.msra.mxu0 %v122
    %477 = vmatprep.subr.mxu0 %v115
    %478 = vmatpush1.msra.mxu0 %v114
    %479 = vmatprep.subr.mxu0 %v107
    %480 = vmatpush1.msra.mxu0 %v106
    %481 = vmatprep.subr.mxu0 %v99
    %482 = vmatpush1.msra.mxu0 %v98
    %483 = vmatprep.subr.mxu0 %v91
    %484 = vmatpush1.msra.mxu0 %v90
    %485 = vmatprep.subr.mxu0 %v83
    %486 = vmatpush1.msra.mxu0 %v82
    %487 = vmatprep.subr.mxu0 %v331
    %488 = vmatpush2.msra.mxu0 %v330
    %489 = vmatprep.subr.mxu0 %v323
    %490 = vmatpush2.msra.mxu0 %v322
    %491 = vmatprep.subr.mxu0 %v315
    %492 = vmatpush2.msra.mxu0 %v314
    %493 = vmatprep.subr.mxu0 %v307
    %494 = vmatpush2.msra.mxu0 %v306
    %495 = vmatprep.subr.mxu0 %v299
    %496 = vmatpush2.msra.mxu0 %v298
    %497 = vmatprep.subr.mxu0 %v291
    %498 = vmatpush2.msra.mxu0 %v290
    %499 = vmatprep.subr.mxu0 %v283
    %500 = vmatpush2.msra.mxu0 %v282
    %501 = vmatprep.subr.mxu0 %v275
    %502 = vmatpush2.msra.mxu0 %v274
    %503 = vmatprep.subr.mxu0 %v267
    %504 = vmatpush2.msra.mxu0 %v266
    %505 = vmatprep.subr.mxu0 %v259
    %506 = vmatpush2.msra.mxu0 %v258
    %507 = vmatprep.subr.mxu0 %v251
    %508 = vmatpush2.msra.mxu0 %v250
    %509 = vmatprep.subr.mxu0 %v243
    %510 = vmatpush2.msra.mxu0 %v242
    %511 = vmatprep.subr.mxu0 %v235
    %512 = vmatpush2.msra.mxu0 %v234
    %513 = vmatprep.subr.mxu0 %v227
    %514 = vmatpush2.msra.mxu0 %v226
    %515 = vmatprep.subr.mxu0 %v219
    %516 = vmatpush2.msra.mxu0 %v218
    %517 = vmatprep.subr.mxu0 %v211
    %518 = vmatpush2.msra.mxu0 %v210
    %519 = vmatprep.mubr.f32.mxu0 %v77
    %520 = vmatmul.mubr.f32.gmra.mxu0 %v76
    %v521 = vpop.f32.mrf.mxu0
    %v522 = vadd.f32 %v349, %v521
    %v523 = vpop.f32.mrf.mxu0
    %v524 = vadd.f32 %v353, %v523
    %525 = vmatprep.mubr.f32.mxu0 %v79
    %526 = vmatmul.mubr.f32.gmra.mxu0 %v78
    %v527 = vpop.f32.mrf.mxu0
    %v528 = vadd.f32 %v349, %v527
    %v529 = vpop.f32.mrf.mxu0
    %v530 = vadd.f32 %v353, %v529
    %531 = vdwg.mxu0
    %532 = vmatprep.subr.mxu0 %v205
    %533 = vmatpush1.msra.mxu0 %v204
    %534 = vmatprep.subr.mxu0 %v197
    %535 = vmatpush1.msra.mxu0 %v196
    %536 = vmatprep.subr.mxu0 %v189
    %537 = vmatpush1.msra.mxu0 %v188
    %538 = vmatprep.subr.mxu0 %v181
    %539 = vmatpush1.msra.mxu0 %v180
    %540 = vmatprep.subr.mxu0 %v173
    %541 = vmatpush1.msra.mxu0 %v172
    %542 = vmatprep.subr.mxu0 %v165
    %543 = vmatpush1.msra.mxu0 %v164
    %544 = vmatprep.subr.mxu0 %v157
    %545 = vmatpush1.msra.mxu0 %v156
    %546 = vmatprep.subr.mxu0 %v149
    %547 = vmatpush1.msra.mxu0 %v148
    %548 = vmatprep.subr.mxu0 %v141
    %549 = vmatpush1.msra.mxu0 %v140
    %550 = vmatprep.subr.mxu0 %v133
    %551 = vmatpush1.msra.mxu0 %v132
    %552 = vmatprep.subr.mxu0 %v125
    %553 = vmatpush1.msra.mxu0 %v124
    %554 = vmatprep.subr.mxu0 %v117
    %555 = vmatpush1.msra.mxu0 %v116
    %556 = vmatprep.subr.mxu0 %v109
    %557 = vmatpush1.msra.mxu0 %v108
    %558 = vmatprep.subr.mxu0 %v101
    %559 = vmatpush1.msra.mxu0 %v100
    %560 = vmatprep.subr.mxu0 %v93
    %561 = vmatpush1.msra.mxu0 %v92
    %562 = vmatprep.subr.mxu0 %v85
    %563 = vmatpush1.msra.mxu0 %v84
    %564 = vmatprep.subr.mxu0 %v333
    %565 = vmatpush2.msra.mxu0 %v332
    %566 = vmatprep.subr.mxu0 %v325
    %567 = vmatpush2.msra.mxu0 %v324
    %568 = vmatprep.subr.mxu0 %v317
    %569 = vmatpush2.msra.mxu0 %v316
    %570 = vmatprep.subr.mxu0 %v309
    %571 = vmatpush2.msra.mxu0 %v308
    %572 = vmatprep.subr.mxu0 %v301
    %573 = vmatpush2.msra.mxu0 %v300
    %574 = vmatprep.subr.mxu0 %v293
    %575 = vmatpush2.msra.mxu0 %v292
    %576 = vmatprep.subr.mxu0 %v285
    %577 = vmatpush2.msra.mxu0 %v284
    %578 = vmatprep.subr.mxu0 %v277
    %579 = vmatpush2.msra.mxu0 %v276
    %580 = vmatprep.subr.mxu0 %v269
    %581 = vmatpush2.msra.mxu0 %v268
    %582 = vmatprep.subr.mxu0 %v261
    %583 = vmatpush2.msra.mxu0 %v260
    %584 = vmatprep.subr.mxu0 %v253
    %585 = vmatpush2.msra.mxu0 %v252
    %586 = vmatprep.subr.mxu0 %v245
    %587 = vmatpush2.msra.mxu0 %v244
    %588 = vmatprep.subr.mxu0 %v237
    %589 = vmatpush2.msra.mxu0 %v236
    %590 = vmatprep.subr.mxu0 %v229
    %591 = vmatpush2.msra.mxu0 %v228
    %592 = vmatprep.subr.mxu0 %v221
    %593 = vmatpush2.msra.mxu0 %v220
    %594 = vmatprep.subr.mxu0 %v213
    %595 = vmatpush2.msra.mxu0 %v212
    %596 = vmatprep.mubr.f32.mxu0 %v77
    %597 = vmatmul.mubr.f32.gmra.mxu0 %v76
    %v598 = vpop.f32.mrf.mxu0
    %v599 = vadd.f32 %v357, %v598
    %v600 = vpop.f32.mrf.mxu0
    %v601 = vadd.f32 %v361, %v600
    %602 = vmatprep.mubr.f32.mxu0 %v79
    %603 = vmatmul.mubr.f32.gmra.mxu0 %v78
    %v604 = vpop.f32.mrf.mxu0
    %v605 = vadd.f32 %v357, %v604
    %v606 = vpop.f32.mrf.mxu0
    %v607 = vadd.f32 %v361, %v606
    %608 = vdwg.mxu0
    %609 = vmatprep.subr.mxu0 %v207
    %610 = vmatpush1.msra.mxu0 %v206
    %611 = vmatprep.subr.mxu0 %v199
    %612 = vmatpush1.msra.mxu0 %v198
    %613 = vmatprep.subr.mxu0 %v191
    %614 = vmatpush1.msra.mxu0 %v190
    %615 = vmatprep.subr.mxu0 %v183
    %616 = vmatpush1.msra.mxu0 %v182
    %617 = vmatprep.subr.mxu0 %v175
    %618 = vmatpush1.msra.mxu0 %v174
    %619 = vmatprep.subr.mxu0 %v167
    %620 = vmatpush1.msra.mxu0 %v166
    %621 = vmatprep.subr.mxu0 %v159
    %622 = vmatpush1.msra.mxu0 %v158
    %623 = vmatprep.subr.mxu0 %v151
    %624 = vmatpush1.msra.mxu0 %v150
    %625 = vmatprep.subr.mxu0 %v143
    %626 = vmatpush1.msra.mxu0 %v142
    %627 = vmatprep.subr.mxu0 %v135
    %628 = vmatpush1.msra.mxu0 %v134
    %629 = vmatprep.subr.mxu0 %v127
    %630 = vmatpush1.msra.mxu0 %v126
    %631 = vmatprep.subr.mxu0 %v119
    %632 = vmatpush1.msra.mxu0 %v118
    %633 = vmatprep.subr.mxu0 %v111
    %634 = vmatpush1.msra.mxu0 %v110
    %635 = vmatprep.subr.mxu0 %v103
    %636 = vmatpush1.msra.mxu0 %v102
    %637 = vmatprep.subr.mxu0 %v95
    %638 = vmatpush1.msra.mxu0 %v94
    %639 = vmatprep.subr.mxu0 %v87
    %640 = vmatpush1.msra.mxu0 %v86
    %641 = vmatprep.subr.mxu0 %v335
    %642 = vmatpush2.msra.mxu0 %v334
    %643 = vmatprep.subr.mxu0 %v327
    %644 = vmatpush2.msra.mxu0 %v326
    %645 = vmatprep.subr.mxu0 %v319
    %646 = vmatpush2.msra.mxu0 %v318
    %647 = vmatprep.subr.mxu0 %v311
    %648 = vmatpush2.msra.mxu0 %v310
    %649 = vmatprep.subr.mxu0 %v303
    %650 = vmatpush2.msra.mxu0 %v302
    %651 = vmatprep.subr.mxu0 %v295
    %652 = vmatpush2.msra.mxu0 %v294
    %653 = vmatprep.subr.mxu0 %v287
    %654 = vmatpush2.msra.mxu0 %v286
    %655 = vmatprep.subr.mxu0 %v279
    %656 = vmatpush2.msra.mxu0 %v278
    %657 = vmatprep.subr.mxu0 %v271
    %658 = vmatpush2.msra.mxu0 %v270
    %659 = vmatprep.subr.mxu0 %v263
    %660 = vmatpush2.msra.mxu0 %v262
    %661 = vmatprep.subr.mxu0 %v255
    %662 = vmatpush2.msra.mxu0 %v254
    %663 = vmatprep.subr.mxu0 %v247
    %664 = vmatpush2.msra.mxu0 %v246
    %665 = vmatprep.subr.mxu0 %v239
    %666 = vmatpush2.msra.mxu0 %v238
    %667 = vmatprep.subr.mxu0 %v231
    %668 = vmatpush2.msra.mxu0 %v230
    %669 = vmatprep.subr.mxu0 %v223
    %670 = vmatpush2.msra.mxu0 %v222
    %671 = vmatprep.subr.mxu0 %v215
    %672 = vmatpush2.msra.mxu0 %v214
    %673 = vmatprep.mubr.f32.mxu0 %v77
    %674 = vmatmul.mubr.f32.gmra.mxu0 %v76
    %v675 = vpop.f32.mrf.mxu0
    %v676 = vadd.f32 %v365, %v675
    %v677 = vpop.f32.mrf.mxu0
    %v678 = vadd.f32 %v369, %v677
    %679 = vmatprep.mubr.f32.mxu0 %v79
    %680 = vmatmul.mubr.f32.gmra.mxu0 %v78
    %v681 = vpop.f32.mrf.mxu0
    %v682 = vadd.f32 %v365, %v681
    %v683 = vpop.f32.mrf.mxu0
    %v684 = vadd.f32 %v369, %v683
    %685 = vdwg.mxu0
    %v686 = vmax.f32 %v445, 0.0
    %v687 = vmax.f32 %v447, 0.0
    %v688 = vmax.f32 %v522, 0.0
    %v689 = vmax.f32 %v524, 0.0
    %v690 = vmax.f32 %v599, 0.0
    %v691 = vmax.f32 %v601, 0.0
    %v692 = vmax.f32 %v676, 0.0
    %v693 = vmax.f32 %v678, 0.0
    %v694 = vmax.f32 %v451, 0.0
    %v695 = vmax.f32 %v453, 0.0
    %v696 = vmax.f32 %v528, 0.0
    %v697 = vmax.f32 %v530, 0.0
    %v698 = vmax.f32 %v605, 0.0
    %v699 = vmax.f32 %v607, 0.0
    %v700 = vmax.f32 %v682, 0.0
    %v701 = vmax.f32 %v684, 0.0
    %v702 = vld [vmem:[#allocation10] sm:$0xff]
    %v703 = vld [vmem:[#allocation10 + $0x8] sm:$0xff]
    %v704 = vld [vmem:[#allocation10 + $0x10] sm:$0xff]
    %v705 = vld [vmem:[#allocation10 + $0x18] sm:$0xff]
    %v706 = vld [vmem:[#allocation10 + $0x20] sm:$0xff]
    %v707 = vld [vmem:[#allocation10 + $0x28] sm:$0xff]
    %v708 = vld [vmem:[#allocation10 + $0x30] sm:$0xff]
    %v709 = vld [vmem:[#allocation10 + $0x38] sm:$0xff]
    %v710 = vld [vmem:[#allocation10 + $0x40] sm:$0xff]
    %v711 = vld [vmem:[#allocation10 + $0x48] sm:$0xff]
    %v712 = vld [vmem:[#allocation10 + $0x50] sm:$0xff]
    %v713 = vld [vmem:[#allocation10 + $0x58] sm:$0xff]
    %v714 = vld [vmem:[#allocation10 + $0x60] sm:$0xff]
    %v715 = vld [vmem:[#allocation10 + $0x68] sm:$0xff]
    %v716 = vld [vmem:[#allocation10 + $0x70] sm:$0xff]
    %v717 = vld [vmem:[#allocation10 + $0x78] sm:$0xff]
    %v718 = vld [vmem:[#allocation10 + $0x80] sm:$0xff]
    %v719 = vld [vmem:[#allocation10 + $0x88] sm:$0xff]
    %v720 = vld [vmem:[#allocation10 + $0x90] sm:$0xff]
    %v721 = vld [vmem:[#allocation10 + $0x98] sm:$0xff]
    %v722 = vld [vmem:[#allocation10 + $0xa0] sm:$0xff]
    %v723 = vld [vmem:[#allocation10 + $0xa8] sm:$0xff]
    %v724 = vld [vmem:[#allocation10 + $0xb0] sm:$0xff]
    %v725 = vld [vmem:[#allocation10 + $0xb8] sm:$0xff]
    %v726 = vld [vmem:[#allocation10 + $0xc0] sm:$0xff]
    %v727 = vld [vmem:[#allocation10 + $0xc8] sm:$0xff]
    %v728 = vld [vmem:[#allocation10 + $0xd0] sm:$0xff]
    %v729 = vld [vmem:[#allocation10 + $0xd8] sm:$0xff]
    %v730 = vld [vmem:[#allocation10 + $0xe0] sm:$0xff]
    %v731 = vld [vmem:[#allocation10 + $0xe8] sm:$0xff]
    %v732 = vld [vmem:[#allocation10 + $0xf0] sm:$0xff]
    %v733 = vld [vmem:[#allocation10 + $0xf8] sm:$0xff]
    %v734 = vld [vmem:[#allocation10 + $0x100] sm:$0xff]
    %v735 = vld [vmem:[#allocation10 + $0x108] sm:$0xff]
    %v736 = vld [vmem:[#allocation10 + $0x110] sm:$0xff]
    %v737 = vld [vmem:[#allocation10 + $0x118] sm:$0xff]
    %v738 = vld [vmem:[#allocation10 + $0x120] sm:$0xff]
    %v739 = vld [vmem:[#allocation10 + $0x128] sm:$0xff]
    %v740 = vld [vmem:[#allocation10 + $0x130] sm:$0xff]
    %v741 = vld [vmem:[#allocation10 + $0x138] sm:$0xff]
    %v742 = vld [vmem:[#allocation10 + $0x140] sm:$0xff]
    %v743 = vld [vmem:[#allocation10 + $0x148] sm:$0xff]
    %v744 = vld [vmem:[#allocation10 + $0x150] sm:$0xff]
    %v745 = vld [vmem:[#allocation10 + $0x158] sm:$0xff]
    %v746 = vld [vmem:[#allocation10 + $0x160] sm:$0xff]
    %v747 = vld [vmem:[#allocation10 + $0x168] sm:$0xff]
    %v748 = vld [vmem:[#allocation10 + $0x170] sm:$0xff]
    %v749 = vld [vmem:[#allocation10 + $0x178] sm:$0xff]
    %v750 = vld [vmem:[#allocation10 + $0x180] sm:$0xff]
    %v751 = vld [vmem:[#allocation10 + $0x188] sm:$0xff]
    %v752 = vld [vmem:[#allocation10 + $0x190] sm:$0xff]
    %v753 = vld [vmem:[#allocation10 + $0x198] sm:$0xff]
    %v754 = vld [vmem:[#allocation10 + $0x1a0] sm:$0xff]
    %v755 = vld [vmem:[#allocation10 + $0x1a8] sm:$0xff]
    %v756 = vld [vmem:[#allocation10 + $0x1b0] sm:$0xff]
    %v757 = vld [vmem:[#allocation10 + $0x1b8] sm:$0xff]
    %v758 = vld [vmem:[#allocation10 + $0x1c0] sm:$0xff]
    %v759 = vld [vmem:[#allocation10 + $0x1c8] sm:$0xff]
    %v760 = vld [vmem:[#allocation10 + $0x1d0] sm:$0xff]
    %v761 = vld [vmem:[#allocation10 + $0x1d8] sm:$0xff]
    %v762 = vld [vmem:[#allocation10 + $0x1e0] sm:$0xff]
    %v763 = vld [vmem:[#allocation10 + $0x1e8] sm:$0xff]
    %v764 = vld [vmem:[#allocation10 + $0x1f0] sm:$0xff]
    %v765 = vld [vmem:[#allocation10 + $0x1f8] sm:$0xff]
    %v766 = vld [vmem:[#allocation10 + $0x200] sm:$0xff]
    %v767 = vld [vmem:[#allocation10 + $0x208] sm:$0xff]
    %v768 = vld [vmem:[#allocation10 + $0x210] sm:$0xff]
    %v769 = vld [vmem:[#allocation10 + $0x218] sm:$0xff]
    %v770 = vld [vmem:[#allocation10 + $0x220] sm:$0xff]
    %v771 = vld [vmem:[#allocation10 + $0x228] sm:$0xff]
    %v772 = vld [vmem:[#allocation10 + $0x230] sm:$0xff]
    %v773 = vld [vmem:[#allocation10 + $0x238] sm:$0xff]
    %v774 = vld [vmem:[#allocation10 + $0x240] sm:$0xff]
    %v775 = vld [vmem:[#allocation10 + $0x248] sm:$0xff]
    %v776 = vld [vmem:[#allocation10 + $0x250] sm:$0xff]
    %v777 = vld [vmem:[#allocation10 + $0x258] sm:$0xff]
    %v778 = vld [vmem:[#allocation10 + $0x260] sm:$0xff]
    %v779 = vld [vmem:[#allocation10 + $0x268] sm:$0xff]
    %v780 = vld [vmem:[#allocation10 + $0x270] sm:$0xff]
    %v781 = vld [vmem:[#allocation10 + $0x278] sm:$0xff]
    %v782 = vld [vmem:[#allocation10 + $0x280] sm:$0xff]
    %v783 = vld [vmem:[#allocation10 + $0x288] sm:$0xff]
    %v784 = vld [vmem:[#allocation10 + $0x290] sm:$0xff]
    %v785 = vld [vmem:[#allocation10 + $0x298] sm:$0xff]
    %v786 = vld [vmem:[#allocation10 + $0x2a0] sm:$0xff]
    %v787 = vld [vmem:[#allocation10 + $0x2a8] sm:$0xff]
    %v788 = vld [vmem:[#allocation10 + $0x2b0] sm:$0xff]
    %v789 = vld [vmem:[#allocation10 + $0x2b8] sm:$0xff]
    %v790 = vld [vmem:[#allocation10 + $0x2c0] sm:$0xff]
    %v791 = vld [vmem:[#allocation10 + $0x2c8] sm:$0xff]
    %v792 = vld [vmem:[#allocation10 + $0x2d0] sm:$0xff]
    %v793 = vld [vmem:[#allocation10 + $0x2d8] sm:$0xff]
    %v794 = vld [vmem:[#allocation10 + $0x2e0] sm:$0xff]
    %v795 = vld [vmem:[#allocation10 + $0x2e8] sm:$0xff]
    %v796 = vld [vmem:[#allocation10 + $0x2f0] sm:$0xff]
    %v797 = vld [vmem:[#allocation10 + $0x2f8] sm:$0xff]
    %v798 = vld [vmem:[#allocation10 + $0x300] sm:$0xff]
    %v799 = vld [vmem:[#allocation10 + $0x308] sm:$0xff]
    %v800 = vld [vmem:[#allocation10 + $0x310] sm:$0xff]
    %v801 = vld [vmem:[#allocation10 + $0x318] sm:$0xff]
    %v802 = vld [vmem:[#allocation10 + $0x320] sm:$0xff]
    %v803 = vld [vmem:[#allocation10 + $0x328] sm:$0xff]
    %v804 = vld [vmem:[#allocation10 + $0x330] sm:$0xff]
    %v805 = vld [vmem:[#allocation10 + $0x338] sm:$0xff]
    %v806 = vld [vmem:[#allocation10 + $0x340] sm:$0xff]
    %v807 = vld [vmem:[#allocation10 + $0x348] sm:$0xff]
    %v808 = vld [vmem:[#allocation10 + $0x350] sm:$0xff]
    %v809 = vld [vmem:[#allocation10 + $0x358] sm:$0xff]
    %v810 = vld [vmem:[#allocation10 + $0x360] sm:$0xff]
    %v811 = vld [vmem:[#allocation10 + $0x368] sm:$0xff]
    %v812 = vld [vmem:[#allocation10 + $0x370] sm:$0xff]
    %v813 = vld [vmem:[#allocation10 + $0x378] sm:$0xff]
    %v814 = vld [vmem:[#allocation10 + $0x380] sm:$0xff]
    %v815 = vld [vmem:[#allocation10 + $0x388] sm:$0xff]
    %v816 = vld [vmem:[#allocation10 + $0x390] sm:$0xff]
    %v817 = vld [vmem:[#allocation10 + $0x398] sm:$0xff]
    %v818 = vld [vmem:[#allocation10 + $0x3a0] sm:$0xff]
    %v819 = vld [vmem:[#allocation10 + $0x3a8] sm:$0xff]
    %v820 = vld [vmem:[#allocation10 + $0x3b0] sm:$0xff]
    %v821 = vld [vmem:[#allocation10 + $0x3b8] sm:$0xff]
    %v822 = vld [vmem:[#allocation10 + $0x3c0] sm:$0xff]
    %v823 = vld [vmem:[#allocation10 + $0x3c8] sm:$0xff]
    %v824 = vld [vmem:[#allocation10 + $0x3d0] sm:$0xff]
    %v825 = vld [vmem:[#allocation10 + $0x3d8] sm:$0xff]
    %v826 = vld [vmem:[#allocation10 + $0x3e0] sm:$0xff]
    %v827 = vld [vmem:[#allocation10 + $0x3e8] sm:$0xff]
    %v828 = vld [vmem:[#allocation10 + $0x3f0] sm:$0xff]
    %v829 = vld [vmem:[#allocation10 + $0x3f8] sm:$0xff]
    %v830 = vld [vmem:[#allocation10 + $0x400] sm:$0xff]
    %v831 = vld [vmem:[#allocation10 + $0x408] sm:$0xff]
    %v832 = vld [vmem:[#allocation10 + $0x410] sm:$0xff]
    %v833 = vld [vmem:[#allocation10 + $0x418] sm:$0xff]
    %v834 = vld [vmem:[#allocation10 + $0x420] sm:$0xff]
    %v835 = vld [vmem:[#allocation10 + $0x428] sm:$0xff]
    %v836 = vld [vmem:[#allocation10 + $0x430] sm:$0xff]
    %v837 = vld [vmem:[#allocation10 + $0x438] sm:$0xff]
    %v838 = vld [vmem:[#allocation10 + $0x440] sm:$0xff]
    %v839 = vld [vmem:[#allocation10 + $0x448] sm:$0xff]
    %v840 = vld [vmem:[#allocation10 + $0x450] sm:$0xff]
    %v841 = vld [vmem:[#allocation10 + $0x458] sm:$0xff]
    %v842 = vld [vmem:[#allocation10 + $0x460] sm:$0xff]
    %v843 = vld [vmem:[#allocation10 + $0x468] sm:$0xff]
    %v844 = vld [vmem:[#allocation10 + $0x470] sm:$0xff]
    %v845 = vld [vmem:[#allocation10 + $0x478] sm:$0xff]
    %v846 = vld [vmem:[#allocation10 + $0x480] sm:$0xff]
    %v847 = vld [vmem:[#allocation10 + $0x488] sm:$0xff]
    %v848 = vld [vmem:[#allocation10 + $0x490] sm:$0xff]
    %v849 = vld [vmem:[#allocation10 + $0x498] sm:$0xff]
    %v850 = vld [vmem:[#allocation10 + $0x4a0] sm:$0xff]
    %v851 = vld [vmem:[#allocation10 + $0x4a8] sm:$0xff]
    %v852 = vld [vmem:[#allocation10 + $0x4b0] sm:$0xff]
    %v853 = vld [vmem:[#allocation10 + $0x4b8] sm:$0xff]
    %v854 = vld [vmem:[#allocation10 + $0x4c0] sm:$0xff]
    %v855 = vld [vmem:[#allocation10 + $0x4c8] sm:$0xff]
    %v856 = vld [vmem:[#allocation10 + $0x4d0] sm:$0xff]
    %v857 = vld [vmem:[#allocation10 + $0x4d8] sm:$0xff]
    %v858 = vld [vmem:[#allocation10 + $0x4e0] sm:$0xff]
    %v859 = vld [vmem:[#allocation10 + $0x4e8] sm:$0xff]
    %v860 = vld [vmem:[#allocation10 + $0x4f0] sm:$0xff]
    %v861 = vld [vmem:[#allocation10 + $0x4f8] sm:$0xff]
    %v862 = vld [vmem:[#allocation10 + $0x500] sm:$0xff]
    %v863 = vld [vmem:[#allocation10 + $0x508] sm:$0xff]
    %v864 = vld [vmem:[#allocation10 + $0x510] sm:$0xff]
    %v865 = vld [vmem:[#allocation10 + $0x518] sm:$0xff]
    %v866 = vld [vmem:[#allocation10 + $0x520] sm:$0xff]
    %v867 = vld [vmem:[#allocation10 + $0x528] sm:$0xff]
    %v868 = vld [vmem:[#allocation10 + $0x530] sm:$0xff]
    %v869 = vld [vmem:[#allocation10 + $0x538] sm:$0xff]
    %v870 = vld [vmem:[#allocation10 + $0x540] sm:$0xff]
    %v871 = vld [vmem:[#allocation10 + $0x548] sm:$0xff]
    %v872 = vld [vmem:[#allocation10 + $0x550] sm:$0xff]
    %v873 = vld [vmem:[#allocation10 + $0x558] sm:$0xff]
    %v874 = vld [vmem:[#allocation10 + $0x560] sm:$0xff]
    %v875 = vld [vmem:[#allocation10 + $0x568] sm:$0xff]
    %v876 = vld [vmem:[#allocation10 + $0x570] sm:$0xff]
    %v877 = vld [vmem:[#allocation10 + $0x578] sm:$0xff]
    %v878 = vld [vmem:[#allocation10 + $0x580] sm:$0xff]
    %v879 = vld [vmem:[#allocation10 + $0x588] sm:$0xff]
    %v880 = vld [vmem:[#allocation10 + $0x590] sm:$0xff]
    %v881 = vld [vmem:[#allocation10 + $0x598] sm:$0xff]
    %v882 = vld [vmem:[#allocation10 + $0x5a0] sm:$0xff]
    %v883 = vld [vmem:[#allocation10 + $0x5a8] sm:$0xff]
    %v884 = vld [vmem:[#allocation10 + $0x5b0] sm:$0xff]
    %v885 = vld [vmem:[#allocation10 + $0x5b8] sm:$0xff]
    %v886 = vld [vmem:[#allocation10 + $0x5c0] sm:$0xff]
    %v887 = vld [vmem:[#allocation10 + $0x5c8] sm:$0xff]
    %v888 = vld [vmem:[#allocation10 + $0x5d0] sm:$0xff]
    %v889 = vld [vmem:[#allocation10 + $0x5d8] sm:$0xff]
    %v890 = vld [vmem:[#allocation10 + $0x5e0] sm:$0xff]
    %v891 = vld [vmem:[#allocation10 + $0x5e8] sm:$0xff]
    %v892 = vld [vmem:[#allocation10 + $0x5f0] sm:$0xff]
    %v893 = vld [vmem:[#allocation10 + $0x5f8] sm:$0xff]
    %v894 = vld [vmem:[#allocation10 + $0x600] sm:$0xff]
    %v895 = vld [vmem:[#allocation10 + $0x608] sm:$0xff]
    %v896 = vld [vmem:[#allocation10 + $0x610] sm:$0xff]
    %v897 = vld [vmem:[#allocation10 + $0x618] sm:$0xff]
    %v898 = vld [vmem:[#allocation10 + $0x620] sm:$0xff]
    %v899 = vld [vmem:[#allocation10 + $0x628] sm:$0xff]
    %v900 = vld [vmem:[#allocation10 + $0x630] sm:$0xff]
    %v901 = vld [vmem:[#allocation10 + $0x638] sm:$0xff]
    %v902 = vld [vmem:[#allocation10 + $0x640] sm:$0xff]
    %v903 = vld [vmem:[#allocation10 + $0x648] sm:$0xff]
    %v904 = vld [vmem:[#allocation10 + $0x650] sm:$0xff]
    %v905 = vld [vmem:[#allocation10 + $0x658] sm:$0xff]
    %v906 = vld [vmem:[#allocation10 + $0x660] sm:$0xff]
    %v907 = vld [vmem:[#allocation10 + $0x668] sm:$0xff]
    %v908 = vld [vmem:[#allocation10 + $0x670] sm:$0xff]
    %v909 = vld [vmem:[#allocation10 + $0x678] sm:$0xff]
    %v910 = vld [vmem:[#allocation10 + $0x680] sm:$0xff]
    %v911 = vld [vmem:[#allocation10 + $0x688] sm:$0xff]
    %v912 = vld [vmem:[#allocation10 + $0x690] sm:$0xff]
    %v913 = vld [vmem:[#allocation10 + $0x698] sm:$0xff]
    %v914 = vld [vmem:[#allocation10 + $0x6a0] sm:$0xff]
    %v915 = vld [vmem:[#allocation10 + $0x6a8] sm:$0xff]
    %v916 = vld [vmem:[#allocation10 + $0x6b0] sm:$0xff]
    %v917 = vld [vmem:[#allocation10 + $0x6b8] sm:$0xff]
    %v918 = vld [vmem:[#allocation10 + $0x6c0] sm:$0xff]
    %v919 = vld [vmem:[#allocation10 + $0x6c8] sm:$0xff]
    %v920 = vld [vmem:[#allocation10 + $0x6d0] sm:$0xff]
    %v921 = vld [vmem:[#allocation10 + $0x6d8] sm:$0xff]
    %v922 = vld [vmem:[#allocation10 + $0x6e0] sm:$0xff]
    %v923 = vld [vmem:[#allocation10 + $0x6e8] sm:$0xff]
    %v924 = vld [vmem:[#allocation10 + $0x6f0] sm:$0xff]
    %v925 = vld [vmem:[#allocation10 + $0x6f8] sm:$0xff]
    %v926 = vld [vmem:[#allocation10 + $0x700] sm:$0xff]
    %v927 = vld [vmem:[#allocation10 + $0x708] sm:$0xff]
    %v928 = vld [vmem:[#allocation10 + $0x710] sm:$0xff]
    %v929 = vld [vmem:[#allocation10 + $0x718] sm:$0xff]
    %v930 = vld [vmem:[#allocation10 + $0x720] sm:$0xff]
    %v931 = vld [vmem:[#allocation10 + $0x728] sm:$0xff]
    %v932 = vld [vmem:[#allocation10 + $0x730] sm:$0xff]
    %v933 = vld [vmem:[#allocation10 + $0x738] sm:$0xff]
    %v934 = vld [vmem:[#allocation10 + $0x740] sm:$0xff]
    %v935 = vld [vmem:[#allocation10 + $0x748] sm:$0xff]
    %v936 = vld [vmem:[#allocation10 + $0x750] sm:$0xff]
    %v937 = vld [vmem:[#allocation10 + $0x758] sm:$0xff]
    %v938 = vld [vmem:[#allocation10 + $0x760] sm:$0xff]
    %v939 = vld [vmem:[#allocation10 + $0x768] sm:$0xff]
    %v940 = vld [vmem:[#allocation10 + $0x770] sm:$0xff]
    %v941 = vld [vmem:[#allocation10 + $0x778] sm:$0xff]
    %v942 = vld [vmem:[#allocation10 + $0x780] sm:$0xff]
    %v943 = vld [vmem:[#allocation10 + $0x788] sm:$0xff]
    %v944 = vld [vmem:[#allocation10 + $0x790] sm:$0xff]
    %v945 = vld [vmem:[#allocation10 + $0x798] sm:$0xff]
    %v946 = vld [vmem:[#allocation10 + $0x7a0] sm:$0xff]
    %v947 = vld [vmem:[#allocation10 + $0x7a8] sm:$0xff]
    %v948 = vld [vmem:[#allocation10 + $0x7b0] sm:$0xff]
    %v949 = vld [vmem:[#allocation10 + $0x7b8] sm:$0xff]
    %v950 = vld [vmem:[#allocation10 + $0x7c0] sm:$0xff]
    %v951 = vld [vmem:[#allocation10 + $0x7c8] sm:$0xff]
    %v952 = vld [vmem:[#allocation10 + $0x7d0] sm:$0xff]
    %v953 = vld [vmem:[#allocation10 + $0x7d8] sm:$0xff]
    %v954 = vld [vmem:[#allocation10 + $0x7e0] sm:$0xff]
    %v955 = vld [vmem:[#allocation10 + $0x7e8] sm:$0xff]
    %v956 = vld [vmem:[#allocation10 + $0x7f0] sm:$0xff]
    %v957 = vld [vmem:[#allocation10 + $0x7f8] sm:$0xff]
    %v958 = vld [vmem:[%s5] sm:$0x3]
    %v960 = vlaneseq
    %v961 = vshrl.u32 %v960, 7
    %v962 = vsub.s32 0, %v961
    %v963 = vrot.slane %v958, %v962
    %v964 = vlaneseq
    %v965 = vshrl.u32 %v964, 7
    %v966 = vsub.s32 1, %v965
    %v967 = vrot.slane %v958, %v966
    %970 = vmatprep.subr.mxu0 %v733
    %971 = vmatpush1.msra.mxu0 %v732
    %972 = vmatprep.subr.mxu0 %v731
    %973 = vmatpush1.msra.mxu0 %v730
    %974 = vmatprep.subr.mxu0 %v729
    %975 = vmatpush1.msra.mxu0 %v728
    %976 = vmatprep.subr.mxu0 %v727
    %977 = vmatpush1.msra.mxu0 %v726
    %978 = vmatprep.subr.mxu0 %v725
    %979 = vmatpush1.msra.mxu0 %v724
    %980 = vmatprep.subr.mxu0 %v723
    %981 = vmatpush1.msra.mxu0 %v722
    %982 = vmatprep.subr.mxu0 %v721
    %983 = vmatpush1.msra.mxu0 %v720
    %984 = vmatprep.subr.mxu0 %v719
    %985 = vmatpush1.msra.mxu0 %v718
    %986 = vmatprep.subr.mxu0 %v717
    %987 = vmatpush1.msra.mxu0 %v716
    %988 = vmatprep.subr.mxu0 %v715
    %989 = vmatpush1.msra.mxu0 %v714
    %990 = vmatprep.subr.mxu0 %v713
    %991 = vmatpush1.msra.mxu0 %v712
    %992 = vmatprep.subr.mxu0 %v711
    %993 = vmatpush1.msra.mxu0 %v710
    %994 = vmatprep.subr.mxu0 %v709
    %995 = vmatpush1.msra.mxu0 %v708
    %996 = vmatprep.subr.mxu0 %v707
    %997 = vmatpush1.msra.mxu0 %v706
    %998 = vmatprep.subr.mxu0 %v705
    %999 = vmatpush1.msra.mxu0 %v704
    %1000 = vmatprep.subr.mxu0 %v703
    %1001 = vmatpush1.msra.mxu0 %v702
    %1002 = vmatprep.subr.mxu0 %v765
    %1003 = vmatpush2.msra.mxu0 %v764
    %1004 = vmatprep.subr.mxu0 %v763
    %1005 = vmatpush2.msra.mxu0 %v762
    %1006 = vmatprep.subr.mxu0 %v761
    %1007 = vmatpush2.msra.mxu0 %v760
    %1008 = vmatprep.subr.mxu0 %v759
    %1009 = vmatpush2.msra.mxu0 %v758
    %1010 = vmatprep.subr.mxu0 %v757
    %1011 = vmatpush2.msra.mxu0 %v756
    %1012 = vmatprep.subr.mxu0 %v755
    %1013 = vmatpush2.msra.mxu0 %v754
    %1014 = vmatprep.subr.mxu0 %v753
    %1015 = vmatpush2.msra.mxu0 %v752
    %1016 = vmatprep.subr.mxu0 %v751
    %1017 = vmatpush2.msra.mxu0 %v750
    %1018 = vmatprep.subr.mxu0 %v749
    %1019 = vmatpush2.msra.mxu0 %v748
    %1020 = vmatprep.subr.mxu0 %v747
    %1021 = vmatpush2.msra.mxu0 %v746
    %1022 = vmatprep.subr.mxu0 %v745
    %1023 = vmatpush2.msra.mxu0 %v744
    %1024 = vmatprep.subr.mxu0 %v743
    %1025 = vmatpush2.msra.mxu0 %v742
    %1026 = vmatprep.subr.mxu0 %v741
    %1027 = vmatpush2.msra.mxu0 %v740
    %1028 = vmatprep.subr.mxu0 %v739
    %1029 = vmatpush2.msra.mxu0 %v738
    %1030 = vmatprep.subr.mxu0 %v737
    %1031 = vmatpush2.msra.mxu0 %v736
    %1032 = vmatprep.subr.mxu0 %v735
    %1033 = vmatpush2.msra.mxu0 %v734
    %1034 = vmatprep.mubr.f32.mxu0 %v687
    %1035 = vmatmul.mubr.f32.gmra.mxu0 %v686
    %v1036 = vpop.f32.mrf.mxu0
    %v1037 = vadd.f32 %v963, %v1036
    %v1038 = vpop.f32.mrf.mxu0
    %v1039 = vadd.f32 %v967, %v1038
    %1040 = vmatprep.mubr.f32.mxu0 %v695
    %1041 = vmatmul.mubr.f32.gmra.mxu0 %v694
    %v1042 = vpop.f32.mrf.mxu0
    %v1043 = vadd.f32 %v963, %v1042
    %v1044 = vpop.f32.mrf.mxu0
    %v1045 = vadd.f32 %v967, %v1044
    %1046 = vdwg.mxu0
    %1047 = vmatprep.subr.mxu0 %v797
    %1048 = vmatpush1.msra.mxu0 %v796
    %1049 = vmatprep.subr.mxu0 %v795
    %1050 = vmatpush1.msra.mxu0 %v794
    %1051 = vmatprep.subr.mxu0 %v793
    %1052 = vmatpush1.msra.mxu0 %v792
    %1053 = vmatprep.subr.mxu0 %v791
    %1054 = vmatpush1.msra.mxu0 %v790
    %1055 = vmatprep.subr.mxu0 %v789
    %1056 = vmatpush1.msra.mxu0 %v788
    %1057 = vmatprep.subr.mxu0 %v787
    %1058 = vmatpush1.msra.mxu0 %v786
    %1059 = vmatprep.subr.mxu0 %v785
    %1060 = vmatpush1.msra.mxu0 %v784
    %1061 = vmatprep.subr.mxu0 %v783
    %1062 = vmatpush1.msra.mxu0 %v782
    %1063 = vmatprep.subr.mxu0 %v781
    %1064 = vmatpush1.msra.mxu0 %v780
    %1065 = vmatprep.subr.mxu0 %v779
    %1066 = vmatpush1.msra.mxu0 %v778
    %1067 = vmatprep.subr.mxu0 %v777
    %1068 = vmatpush1.msra.mxu0 %v776
    %1069 = vmatprep.subr.mxu0 %v775
    %1070 = vmatpush1.msra.mxu0 %v774
    %1071 = vmatprep.subr.mxu0 %v773
    %1072 = vmatpush1.msra.mxu0 %v772
    %1073 = vmatprep.subr.mxu0 %v771
    %1074 = vmatpush1.msra.mxu0 %v770
    %1075 = vmatprep.subr.mxu0 %v769
    %1076 = vmatpush1.msra.mxu0 %v768
    %1077 = vmatprep.subr.mxu0 %v767
    %1078 = vmatpush1.msra.mxu0 %v766
    %1079 = vmatprep.subr.mxu0 %v829
    %1080 = vmatpush2.msra.mxu0 %v828
    %1081 = vmatprep.subr.mxu0 %v827
    %1082 = vmatpush2.msra.mxu0 %v826
    %1083 = vmatprep.subr.mxu0 %v825
    %1084 = vmatpush2.msra.mxu0 %v824
    %1085 = vmatprep.subr.mxu0 %v823
    %1086 = vmatpush2.msra.mxu0 %v822
    %1087 = vmatprep.subr.mxu0 %v821
    %1088 = vmatpush2.msra.mxu0 %v820
    %1089 = vmatprep.subr.mxu0 %v819
    %1090 = vmatpush2.msra.mxu0 %v818
    %1091 = vmatprep.subr.mxu0 %v817
    %1092 = vmatpush2.msra.mxu0 %v816
    %1093 = vmatprep.subr.mxu0 %v815
    %1094 = vmatpush2.msra.mxu0 %v814
    %1095 = vmatprep.subr.mxu0 %v813
    %1096 = vmatpush2.msra.mxu0 %v812
    %1097 = vmatprep.subr.mxu0 %v811
    %1098 = vmatpush2.msra.mxu0 %v810
    %1099 = vmatprep.subr.mxu0 %v809
    %1100 = vmatpush2.msra.mxu0 %v808
    %1101 = vmatprep.subr.mxu0 %v807
    %1102 = vmatpush2.msra.mxu0 %v806
    %1103 = vmatprep.subr.mxu0 %v805
    %1104 = vmatpush2.msra.mxu0 %v804
    %1105 = vmatprep.subr.mxu0 %v803
    %1106 = vmatpush2.msra.mxu0 %v802
    %1107 = vmatprep.subr.mxu0 %v801
    %1108 = vmatpush2.msra.mxu0 %v800
    %1109 = vmatprep.subr.mxu0 %v799
    %1110 = vmatpush2.msra.mxu0 %v798
    %1111 = vmatprep.mubr.f32.mxu0 %v689
    %1112 = vmatmul.mubr.f32.gmra.mxu0 %v688
    %v1113 = vpop.f32.mrf.mxu0
    %v1114 = vadd.f32 %v1037, %v1113
    %v1115 = vpop.f32.mrf.mxu0
    %v1116 = vadd.f32 %v1039, %v1115
    %1117 = vmatprep.mubr.f32.mxu0 %v697
    %1118 = vmatmul.mubr.f32.gmra.mxu0 %v696
    %v1119 = vpop.f32.mrf.mxu0
    %v1120 = vadd.f32 %v1043, %v1119
    %v1121 = vpop.f32.mrf.mxu0
    %v1122 = vadd.f32 %v1045, %v1121
    %1123 = vdwg.mxu0
    %1124 = vmatprep.subr.mxu0 %v861
    %1125 = vmatpush1.msra.mxu0 %v860
    %1126 = vmatprep.subr.mxu0 %v859
    %1127 = vmatpush1.msra.mxu0 %v858
    %1128 = vmatprep.subr.mxu0 %v857
    %1129 = vmatpush1.msra.mxu0 %v856
    %1130 = vmatprep.subr.mxu0 %v855
    %1131 = vmatpush1.msra.mxu0 %v854
    %1132 = vmatprep.subr.mxu0 %v853
    %1133 = vmatpush1.msra.mxu0 %v852
    %1134 = vmatprep.subr.mxu0 %v851
    %1135 = vmatpush1.msra.mxu0 %v850
    %1136 = vmatprep.subr.mxu0 %v849
    %1137 = vmatpush1.msra.mxu0 %v848
    %1138 = vmatprep.subr.mxu0 %v847
    %1139 = vmatpush1.msra.mxu0 %v846
    %1140 = vmatprep.subr.mxu0 %v845
    %1141 = vmatpush1.msra.mxu0 %v844
    %1142 = vmatprep.subr.mxu0 %v843
    %1143 = vmatpush1.msra.mxu0 %v842
    %1144 = vmatprep.subr.mxu0 %v841
    %1145 = vmatpush1.msra.mxu0 %v840
    %1146 = vmatprep.subr.mxu0 %v839
    %1147 = vmatpush1.msra.mxu0 %v838
    %1148 = vmatprep.subr.mxu0 %v837
    %1149 = vmatpush1.msra.mxu0 %v836
    %1150 = vmatprep.subr.mxu0 %v835
    %1151 = vmatpush1.msra.mxu0 %v834
    %1152 = vmatprep.subr.mxu0 %v833
    %1153 = vmatpush1.msra.mxu0 %v832
    %1154 = vmatprep.subr.mxu0 %v831
    %1155 = vmatpush1.msra.mxu0 %v830
    %1156 = vmatprep.subr.mxu0 %v893
    %1157 = vmatpush2.msra.mxu0 %v892
    %1158 = vmatprep.subr.mxu0 %v891
    %1159 = vmatpush2.msra.mxu0 %v890
    %1160 = vmatprep.subr.mxu0 %v889
    %1161 = vmatpush2.msra.mxu0 %v888
    %1162 = vmatprep.subr.mxu0 %v887
    %1163 = vmatpush2.msra.mxu0 %v886
    %1164 = vmatprep.subr.mxu0 %v885
    %1165 = vmatpush2.msra.mxu0 %v884
    %1166 = vmatprep.subr.mxu0 %v883
    %1167 = vmatpush2.msra.mxu0 %v882
    %1168 = vmatprep.subr.mxu0 %v881
    %1169 = vmatpush2.msra.mxu0 %v880
    %1170 = vmatprep.subr.mxu0 %v879
    %1171 = vmatpush2.msra.mxu0 %v878
    %1172 = vmatprep.subr.mxu0 %v877
    %1173 = vmatpush2.msra.mxu0 %v876
    %1174 = vmatprep.subr.mxu0 %v875
    %1175 = vmatpush2.msra.mxu0 %v874
    %1176 = vmatprep.subr.mxu0 %v873
    %1177 = vmatpush2.msra.mxu0 %v872
    %1178 = vmatprep.subr.mxu0 %v871
    %1179 = vmatpush2.msra.mxu0 %v870
    %1180 = vmatprep.subr.mxu0 %v869
    %1181 = vmatpush2.msra.mxu0 %v868
    %1182 = vmatprep.subr.mxu0 %v867
    %1183 = vmatpush2.msra.mxu0 %v866
    %1184 = vmatprep.subr.mxu0 %v865
    %1185 = vmatpush2.msra.mxu0 %v864
    %1186 = vmatprep.subr.mxu0 %v863
    %1187 = vmatpush2.msra.mxu0 %v862
    %1188 = vmatprep.mubr.f32.mxu0 %v691
    %1189 = vmatmul.mubr.f32.gmra.mxu0 %v690
    %v1190 = vpop.f32.mrf.mxu0
    %v1191 = vadd.f32 %v1114, %v1190
    %v1192 = vpop.f32.mrf.mxu0
    %v1193 = vadd.f32 %v1116, %v1192
    %1194 = vmatprep.mubr.f32.mxu0 %v699
    %1195 = vmatmul.mubr.f32.gmra.mxu0 %v698
    %v1196 = vpop.f32.mrf.mxu0
    %v1197 = vadd.f32 %v1120, %v1196
    %v1198 = vpop.f32.mrf.mxu0
    %v1199 = vadd.f32 %v1122, %v1198
    %1200 = vdwg.mxu0
    %1201 = vmatprep.subr.mxu0 %v925
    %1202 = vmatpush1.msra.mxu0 %v924
    %1203 = vmatprep.subr.mxu0 %v923
    %1204 = vmatpush1.msra.mxu0 %v922
    %1205 = vmatprep.subr.mxu0 %v921
    %1206 = vmatpush1.msra.mxu0 %v920
    %1207 = vmatprep.subr.mxu0 %v919
    %1208 = vmatpush1.msra.mxu0 %v918
    %1209 = vmatprep.subr.mxu0 %v917
    %1210 = vmatpush1.msra.mxu0 %v916
    %1211 = vmatprep.subr.mxu0 %v915
    %1212 = vmatpush1.msra.mxu0 %v914
    %1213 = vmatprep.subr.mxu0 %v913
    %1214 = vmatpush1.msra.mxu0 %v912
    %1215 = vmatprep.subr.mxu0 %v911
    %1216 = vmatpush1.msra.mxu0 %v910
    %1217 = vmatprep.subr.mxu0 %v909
    %1218 = vmatpush1.msra.mxu0 %v908
    %1219 = vmatprep.subr.mxu0 %v907
    %1220 = vmatpush1.msra.mxu0 %v906
    %1221 = vmatprep.subr.mxu0 %v905
    %1222 = vmatpush1.msra.mxu0 %v904
    %1223 = vmatprep.subr.mxu0 %v903
    %1224 = vmatpush1.msra.mxu0 %v902
    %1225 = vmatprep.subr.mxu0 %v901
    %1226 = vmatpush1.msra.mxu0 %v900
    %1227 = vmatprep.subr.mxu0 %v899
    %1228 = vmatpush1.msra.mxu0 %v898
    %1229 = vmatprep.subr.mxu0 %v897
    %1230 = vmatpush1.msra.mxu0 %v896
    %1231 = vmatprep.subr.mxu0 %v895
    %1232 = vmatpush1.msra.mxu0 %v894
    %1233 = vmatprep.subr.mxu0 %v957
    %1234 = vmatpush2.msra.mxu0 %v956
    %1235 = vmatprep.subr.mxu0 %v955
    %1236 = vmatpush2.msra.mxu0 %v954
    %1237 = vmatprep.subr.mxu0 %v953
    %1238 = vmatpush2.msra.mxu0 %v952
    %1239 = vmatprep.subr.mxu0 %v951
    %1240 = vmatpush2.msra.mxu0 %v950
    %1241 = vmatprep.subr.mxu0 %v949
    %1242 = vmatpush2.msra.mxu0 %v948
    %1243 = vmatprep.subr.mxu0 %v947
    %1244 = vmatpush2.msra.mxu0 %v946
    %1245 = vmatprep.subr.mxu0 %v945
    %1246 = vmatpush2.msra.mxu0 %v944
    %1247 = vmatprep.subr.mxu0 %v943
    %1248 = vmatpush2.msra.mxu0 %v942
    %1249 = vmatprep.subr.mxu0 %v941
    %1250 = vmatpush2.msra.mxu0 %v940
    %1251 = vmatprep.subr.mxu0 %v939
    %1252 = vmatpush2.msra.mxu0 %v938
    %1253 = vmatprep.subr.mxu0 %v937
    %1254 = vmatpush2.msra.mxu0 %v936
    %1255 = vmatprep.subr.mxu0 %v935
    %1256 = vmatpush2.msra.mxu0 %v934
    %1257 = vmatprep.subr.mxu0 %v933
    %1258 = vmatpush2.msra.mxu0 %v932
    %1259 = vmatprep.subr.mxu0 %v931
    %1260 = vmatpush2.msra.mxu0 %v930
    %1261 = vmatprep.subr.mxu0 %v929
    %1262 = vmatpush2.msra.mxu0 %v928
    %1263 = vmatprep.subr.mxu0 %v927
    %1264 = vmatpush2.msra.mxu0 %v926
    %1265 = vmatprep.mubr.f32.mxu0 %v693
    %1266 = vmatmul.mubr.f32.gmra.mxu0 %v692
    %v1267 = vpop.f32.mrf.mxu0
    %v1268 = vadd.f32 %v1191, %v1267
    %v1269 = vpop.f32.mrf.mxu0
    %v1270 = vadd.f32 %v1193, %v1269
    %1271 = vmatprep.mubr.f32.mxu0 %v701
    %1272 = vmatmul.mubr.f32.gmra.mxu0 %v700
    %v1273 = vpop.f32.mrf.mxu0
    %v1274 = vadd.f32 %v1197, %v1273
    %v1275 = vpop.f32.mrf.mxu0
    %v1276 = vadd.f32 %v1199, %v1275
    %1277 = vdwg.mxu0
    %1278 = vst [vmem:[#allocation12] sm:$0xff] %v1268
    %1279 = vst [vmem:[#allocation12 + $0x8] sm:$0xff] %v1270
    %1280 = vst [vmem:[#allocation12 + $0x10] sm:$0xff] %v1274
    %1281 = vst [vmem:[#allocation12 + $0x18] sm:$0xff] %v1276
    // Predicated region
    $region38: #{tpu_custom_call.1} parent=1 // pred_check
      _
    $region39: #{tpu_custom_call.1} parent=1 // pred_check_branch
      %1283 = sbr.rel (0) target = $region41
    $region40: #{tpu_custom_call.1} parent=1 // pred_region
      %s1285 = ssub.s32 512, 512
      %1286 = vsyncadd [#allocation6], %s1285
      %s1287 = sshll.u32 [#allocation12], 4
      %s1288 = int_to_ptr.vmem [resolvable:$true] %s1287
      %1293 = dma.vmem_to_hbm [thread:$0]  %s1288, 512, %s6, [#allocation6], 256, 256, 16
    $region41: #{tpu_custom_call.1} parent=1 // pred_fallthru
      _
    // Predicated region
    $region42: #{tpu_custom_call.1} parent=1 // pred_check
      _
    $region43: #{tpu_custom_call.1} parent=1 // pred_check_branch
      %1295 = sbr.rel (0) target = $region45
    $region44: #{tpu_custom_call.1} parent=1 // pred_region
      %1296 = dma.done [#allocation6], 512
    $region45: #{tpu_custom_call.1} parent=1 // pred_fallthru
      _
    %1297 = vsyncpa [#allocation5], 1
    %1298 = vsyncpa [#allocation8], 1
    %1299 = vsyncpa [#allocation11], 1
    %1300 = vsyncpa [#allocation6], 1

</llo_original>
